<compile_context>
chip_gen: v7x
topology: tpu7x:2x2x1
jax: 0.10.0
libtpu: 0.0.40
codegen_flags: <defaults>
</compile_context>

<pallas_src>
import functools

import jax
import jax.numpy as jnp
from jax.experimental import pallas as pl
from jax.experimental.pallas import tpu as pltpu


def _round_up(x, m):
    return (x + m - 1) // m * m


def dan_kernel(ids_ref, len_ref, emb_ref, w1_ref, b1_ref, w2_ref, b2_ref, o_ref,
               *, approx_recip):
    ids = ids_ref[...]                                   # [TB, S] int32
    tb = ids.shape[0]
    seq_len = ids.shape[1]
    V = emb_ref.shape[0]

    # --- In-kernel token counts: counts[b, v] = sum_s (ids[b, s] == v) ---------------
    # Short unrolled loop over the (small, static) sequence axis; one [TB, V] f32
    # accumulator, no [TB, S, V] intermediate.  Trivial VPU work, hides under the MXU.
    vocab_iota = jax.lax.broadcasted_iota(jnp.int32, (tb, V), 1)   # [TB, V]
    counts = jnp.zeros((tb, V), jnp.float32)
    for s in range(seq_len):
        counts = counts + jnp.where(ids[:, s:s + 1] == vocab_iota, 1.0, 0.0)

    # --- AveragingLayer as an MXU op: sum_s emb[ids[b,s]] == counts @ emb_table ------
    x = jnp.dot(counts.astype(emb_ref.dtype), emb_ref[...],
                preferred_element_type=jnp.float32)                 # [TB, E] f32
    # Divide by lengths (zero-length guard via max(len, 1)); approx=True uses the EUP
    # reciprocal slot (~1e-4 rel error), exact path kept for the strict f32 test.
    inv_len = pl.reciprocal(jnp.maximum(len_ref[...], 1.0), approx=approx_recip)
    x = x * inv_len

    # --- fcnet layer 0: Dropout (identity at eval) -> Linear -> ReLU -----------------
    h = jnp.dot(x.astype(w1_ref.dtype), w1_ref[...], preferred_element_type=jnp.float32)
    h = jnp.maximum(h + b1_ref[...], 0.0)

    # --- fcnet layer 1: Dropout (identity) -> Linear -> ReLU -------------------------
    h = jnp.dot(h.astype(w2_ref.dtype), w2_ref[...], preferred_element_type=jnp.float32)
    h = jnp.maximum(h + b2_ref[...], 0.0)

    o_ref[...] = h.astype(o_ref.dtype)


def dan_feature_extractor(token_ids, lengths, emb_table, w1, b1, w2, b2,
                          *, param_dtype=jnp.bfloat16, out_dtype=jnp.float32,
                          approx_recip=True, max_single_tile=1024, batch_tile=512):
    """token_ids: int32 [B, S]; lengths: int [B].  Returns [B, HIDDEN] in out_dtype."""
    B, S = token_ids.shape
    V, E = emb_table.shape
    H = w1.shape[1]

    # Batch tiling: one big tile (single grid step) for small/medium B — at ~MFLOP work
    # the kernel is otherwise dominated by fixed per-step pipeline overhead.  For large
    # B use 512-row tiles (fills the 256-row MXU, meaningful per-TC work on v7x).
    if B <= max_single_tile:
        tb = _round_up(max(B, 16), 16)        # mult. of 16: safe for bf16 output tiles
    else:
        tb = batch_tile
    Bp = _round_up(B, tb)
    n_steps = Bp // tb

    ids = token_ids.astype(jnp.int32)
    len_f = lengths.astype(jnp.float32).reshape(B, 1)
    if Bp != B:
        ids = jnp.pad(ids, ((0, Bp - B), (0, 0)))                       # pad id = 0
        len_f = jnp.pad(len_f, ((0, Bp - B), (0, 0)), constant_values=1.0)

    # Parameters: bf16 storage by default (f32 accumulation in-kernel).
    emb_p = emb_table.astype(param_dtype)
    w1_p = w1.astype(param_dtype)
    w2_p = w2.astype(param_dtype)
    b1_p = b1.astype(jnp.float32).reshape(1, H)
    b2_p = b2.astype(jnp.float32).reshape(1, H)

    kernel = functools.partial(dan_kernel, approx_recip=approx_recip)

    out = pl.pallas_call(
        kernel,
        out_shape=jax.ShapeDtypeStruct((Bp, H), out_dtype),
        grid=(n_steps,),
        in_specs=[
            pl.BlockSpec((tb, S), lambda i: (i, 0)),   # token ids (streamed per batch tile)
            pl.BlockSpec((tb, 1), lambda i: (i, 0)),   # lengths   (streamed per batch tile)
            pl.BlockSpec((V, E), lambda i: (0, 0)),    # emb_table (VMEM-resident)
            pl.BlockSpec((E, H), lambda i: (0, 0)),    # w1        (VMEM-resident)
            pl.BlockSpec((1, H), lambda i: (0, 0)),    # b1
            pl.BlockSpec((H, H), lambda i: (0, 0)),    # w2
            pl.BlockSpec((1, H), lambda i: (0, 0)),    # b2
        ],
        out_specs=pl.BlockSpec((tb, H), lambda i: (i, 0)),   # lane-dense (H = 128)
        compiler_params=pltpu.CompilerParams(
            # Split batch tiles across TCs only when there is real per-TC work.
            dimension_semantics=("parallel",) if n_steps > 1 else ("arbitrary",),
        ),
    )(ids, len_f, emb_p, w1_p, b1_p, w2_p, b2_p)

    return out[:B]


def reference(token_ids, lengths, emb_table, w1, b1, w2, b2):
    embeds = jnp.take(emb_table, token_ids, axis=0)              # [B, S, E]
    x = embeds.sum(axis=1) / lengths.astype(jnp.float32)[:, None]
    h = jnp.maximum(x @ w1 + b1, 0.0)
    h = jnp.maximum(h @ w2 + b2, 0.0)
    return h


if __name__ == "__main__":
    # Module hyperparameters (synthetic, deterministic init — no checkpoint load).
    VOCAB = 128       # small vocab -> counts@emb_table formulation
    EMB = 128         # vocab.emb_size   (lane-dense)
    HIDDEN = 128      # hidden_size      (lane-dense output)
    B, S = 128, 16    # batch, max sentence length
    # num_layers=2, sum_pooling=False, dropout>0 but eval mode (identity), batch_norm=False

    key = jax.random.PRNGKey(0)
    k_emb, k_w1, k_b1, k_w2, k_b2, k_tok, k_len = jax.random.split(key, 7)

    emb_table = jax.random.normal(k_emb, (VOCAB, EMB), jnp.float32) * 0.1
    w1 = jax.random.normal(k_w1, (EMB, HIDDEN), jnp.float32) * 0.1   # torch Linear weight.T
    b1 = jax.random.normal(k_b1, (1, HIDDEN), jnp.float32) * 0.1
    w2 = jax.random.normal(k_w2, (HIDDEN, HIDDEN), jnp.float32) * 0.1
    b2 = jax.random.normal(k_b2, (1, HIDDEN), jnp.float32) * 0.1

    token_ids = jax.random.randint(k_tok, (B, S), 1, VOCAB, dtype=jnp.int32)
    lengths = jax.random.randint(k_len, (B,), 1, S + 1, dtype=jnp.int32)
    # zero-pad positions past each sequence's length (typical usage; pad id = 0)
    pos = jnp.arange(S)[None, :]
    token_ids = jnp.where(pos < lengths[:, None], token_ids, 0)

    # --- f32 parameters, exact reciprocal: tight check vs the gather/sum reference ---
    out = dan_feature_extractor(token_ids, lengths, emb_table, w1, b1, w2, b2,
                                param_dtype=jnp.float32, out_dtype=jnp.float32,
                                approx_recip=False)
    out = jax.block_until_ready(out)
    ref = reference(token_ids, lengths, emb_table, w1, b1, w2, b2)
    assert out.shape == (B, HIDDEN)
    assert jnp.allclose(out, ref, atol=1e-4, rtol=1e-4), "f32 mismatch vs reference"

    # --- production path: bf16 params, bf16 output, approx reciprocal (defaults) -----
    # Loose check vs a reference built from the same bf16-rounded parameters
    # (f32 accumulation in both).
    out_bf = dan_feature_extractor(token_ids, lengths, emb_table, w1, b1, w2, b2,
                                   out_dtype=jnp.bfloat16)
    out_bf = jax.block_until_ready(out_bf)
    to_f32 = lambda a: a.astype(jnp.bfloat16).astype(jnp.float32)
    ref_bf = reference(token_ids, lengths, to_f32(emb_table), to_f32(w1), b1,
                       to_f32(w2), b2)
    assert out_bf.dtype == jnp.bfloat16
    assert jnp.allclose(out_bf.astype(jnp.float32), ref_bf, atol=5e-2, rtol=5e-2), \
        "bf16 mismatch vs reference"

    print("KERNEL_OK")
</pallas_src>

<mosaic_0001>
module attributes {stable_mosaic.version = 11 : i64} {
  func.func @dan_kernel(%arg0: i32, %arg1: memref<128x16xi32, #tpu.memory_space<vmem>>, %arg2: memref<128x1xf32, #tpu.memory_space<vmem>>, %arg3: memref<128x128xf32, #tpu.memory_space<vmem>>, %arg4: memref<128x128xf32, #tpu.memory_space<vmem>>, %arg5: memref<1x128xf32, #tpu.memory_space<vmem>>, %arg6: memref<128x128xf32, #tpu.memory_space<vmem>>, %arg7: memref<1x128xf32, #tpu.memory_space<vmem>>, %arg8: memref<128x128xf32, #tpu.memory_space<vmem>>) attributes {dimension_semantics = [#tpu.dimension_semantics<arbitrary>], iteration_bounds = array<i64: 1>, scalar_prefetch = 0 : i64, scratch_operands = 0 : i64, tpu.core_type = #tpu.core_type<tc>, window_params = [{transform_indices = @transform_0, window_bounds = array<i64: 128, 16>}, {transform_indices = @transform_1, window_bounds = array<i64: 128, 1>}, {pipeline_mode = #tpu.pipeline_mode<synchronous>, transform_indices = @transform_2, window_bounds = array<i64: 128, 128>}, {pipeline_mode = #tpu.pipeline_mode<synchronous>, transform_indices = @transform_3, window_bounds = array<i64: 128, 128>}, {pipeline_mode = #tpu.pipeline_mode<synchronous>, transform_indices = @transform_4, window_bounds = array<i64: 1, 128>}, {pipeline_mode = #tpu.pipeline_mode<synchronous>, transform_indices = @transform_5, window_bounds = array<i64: 128, 128>}, {pipeline_mode = #tpu.pipeline_mode<synchronous>, transform_indices = @transform_6, window_bounds = array<i64: 1, 128>}, {transform_indices = @transform_7, window_bounds = array<i64: 128, 128>}]} {
    %c0 = arith.constant 0 : index
    %c0_0 = arith.constant 0 : index
    %0 = vector.load %arg1[%c0, %c0_0] : memref<128x16xi32, #tpu.memory_space<vmem>>, vector<128x16xi32>
    %1 = tpu.iota {dimensions = array<i32: 1>} : vector<128x128xi32>
    %cst = arith.constant 0.000000e+00 : f32
    %2 = vector.broadcast %cst : f32 to vector<128x128xf32>
    %3 = vector.extract_strided_slice %0 {offsets = [0, 0], sizes = [128, 1], strides = [1, 1]} : vector<128x16xi32> to vector<128x1xi32>
    %4 = vector.broadcast %3 : vector<128x1xi32> to vector<128x128xi32>
    %5 = arith.cmpi eq, %4, %1 : vector<128x128xi32>
    %cst_1 = arith.constant 1.000000e+00 : f32
    %cst_2 = arith.constant 0.000000e+00 : f32
    %6 = vector.broadcast %cst_1 : f32 to vector<128x128xf32>
    %7 = vector.broadcast %cst_2 : f32 to vector<128x128xf32>
    %8 = arith.select %5, %6, %7 : vector<128x128xi1>, vector<128x128xf32>
    %9 = arith.addf %2, %8 : vector<128x128xf32>
    %10 = vector.extract_strided_slice %0 {offsets = [0, 1], sizes = [128, 1], strides = [1, 1]} : vector<128x16xi32> to vector<128x1xi32>
    %11 = vector.broadcast %10 : vector<128x1xi32> to vector<128x128xi32>
    %12 = arith.cmpi eq, %11, %1 : vector<128x128xi32>
    %cst_3 = arith.constant 1.000000e+00 : f32
    %cst_4 = arith.constant 0.000000e+00 : f32
    %13 = vector.broadcast %cst_3 : f32 to vector<128x128xf32>
    %14 = vector.broadcast %cst_4 : f32 to vector<128x128xf32>
    %15 = arith.select %12, %13, %14 : vector<128x128xi1>, vector<128x128xf32>
    %16 = arith.addf %9, %15 : vector<128x128xf32>
    %17 = vector.extract_strided_slice %0 {offsets = [0, 2], sizes = [128, 1], strides = [1, 1]} : vector<128x16xi32> to vector<128x1xi32>
    %18 = vector.broadcast %17 : vector<128x1xi32> to vector<128x128xi32>
    %19 = arith.cmpi eq, %18, %1 : vector<128x128xi32>
    %cst_5 = arith.constant 1.000000e+00 : f32
    %cst_6 = arith.constant 0.000000e+00 : f32
    %20 = vector.broadcast %cst_5 : f32 to vector<128x128xf32>
    %21 = vector.broadcast %cst_6 : f32 to vector<128x128xf32>
    %22 = arith.select %19, %20, %21 : vector<128x128xi1>, vector<128x128xf32>
    %23 = arith.addf %16, %22 : vector<128x128xf32>
    %24 = vector.extract_strided_slice %0 {offsets = [0, 3], sizes = [128, 1], strides = [1, 1]} : vector<128x16xi32> to vector<128x1xi32>
    %25 = vector.broadcast %24 : vector<128x1xi32> to vector<128x128xi32>
    %26 = arith.cmpi eq, %25, %1 : vector<128x128xi32>
    %cst_7 = arith.constant 1.000000e+00 : f32
    %cst_8 = arith.constant 0.000000e+00 : f32
    %27 = vector.broadcast %cst_7 : f32 to vector<128x128xf32>
    %28 = vector.broadcast %cst_8 : f32 to vector<128x128xf32>
    %29 = arith.select %26, %27, %28 : vector<128x128xi1>, vector<128x128xf32>
    %30 = arith.addf %23, %29 : vector<128x128xf32>
    %31 = vector.extract_strided_slice %0 {offsets = [0, 4], sizes = [128, 1], strides = [1, 1]} : vector<128x16xi32> to vector<128x1xi32>
    %32 = vector.broadcast %31 : vector<128x1xi32> to vector<128x128xi32>
    %33 = arith.cmpi eq, %32, %1 : vector<128x128xi32>
    %cst_9 = arith.constant 1.000000e+00 : f32
    %cst_10 = arith.constant 0.000000e+00 : f32
    %34 = vector.broadcast %cst_9 : f32 to vector<128x128xf32>
    %35 = vector.broadcast %cst_10 : f32 to vector<128x128xf32>
    %36 = arith.select %33, %34, %35 : vector<128x128xi1>, vector<128x128xf32>
    %37 = arith.addf %30, %36 : vector<128x128xf32>
    %38 = vector.extract_strided_slice %0 {offsets = [0, 5], sizes = [128, 1], strides = [1, 1]} : vector<128x16xi32> to vector<128x1xi32>
    %39 = vector.broadcast %38 : vector<128x1xi32> to vector<128x128xi32>
    %40 = arith.cmpi eq, %39, %1 : vector<128x128xi32>
    %cst_11 = arith.constant 1.000000e+00 : f32
    %cst_12 = arith.constant 0.000000e+00 : f32
    %41 = vector.broadcast %cst_11 : f32 to vector<128x128xf32>
    %42 = vector.broadcast %cst_12 : f32 to vector<128x128xf32>
    %43 = arith.select %40, %41, %42 : vector<128x128xi1>, vector<128x128xf32>
    %44 = arith.addf %37, %43 : vector<128x128xf32>
    %45 = vector.extract_strided_slice %0 {offsets = [0, 6], sizes = [128, 1], strides = [1, 1]} : vector<128x16xi32> to vector<128x1xi32>
    %46 = vector.broadcast %45 : vector<128x1xi32> to vector<128x128xi32>
    %47 = arith.cmpi eq, %46, %1 : vector<128x128xi32>
    %cst_13 = arith.constant 1.000000e+00 : f32
    %cst_14 = arith.constant 0.000000e+00 : f32
    %48 = vector.broadcast %cst_13 : f32 to vector<128x128xf32>
    %49 = vector.broadcast %cst_14 : f32 to vector<128x128xf32>
    %50 = arith.select %47, %48, %49 : vector<128x128xi1>, vector<128x128xf32>
    %51 = arith.addf %44, %50 : vector<128x128xf32>
    %52 = vector.extract_strided_slice %0 {offsets = [0, 7], sizes = [128, 1], strides = [1, 1]} : vector<128x16xi32> to vector<128x1xi32>
    %53 = vector.broadcast %52 : vector<128x1xi32> to vector<128x128xi32>
    %54 = arith.cmpi eq, %53, %1 : vector<128x128xi32>
    %cst_15 = arith.constant 1.000000e+00 : f32
    %cst_16 = arith.constant 0.000000e+00 : f32
    %55 = vector.broadcast %cst_15 : f32 to vector<128x128xf32>
    %56 = vector.broadcast %cst_16 : f32 to vector<128x128xf32>
    %57 = arith.select %54, %55, %56 : vector<128x128xi1>, vector<128x128xf32>
    %58 = arith.addf %51, %57 : vector<128x128xf32>
    %59 = vector.extract_strided_slice %0 {offsets = [0, 8], sizes = [128, 1], strides = [1, 1]} : vector<128x16xi32> to vector<128x1xi32>
    %60 = vector.broadcast %59 : vector<128x1xi32> to vector<128x128xi32>
    %61 = arith.cmpi eq, %60, %1 : vector<128x128xi32>
    %cst_17 = arith.constant 1.000000e+00 : f32
    %cst_18 = arith.constant 0.000000e+00 : f32
    %62 = vector.broadcast %cst_17 : f32 to vector<128x128xf32>
    %63 = vector.broadcast %cst_18 : f32 to vector<128x128xf32>
    %64 = arith.select %61, %62, %63 : vector<128x128xi1>, vector<128x128xf32>
    %65 = arith.addf %58, %64 : vector<128x128xf32>
    %66 = vector.extract_strided_slice %0 {offsets = [0, 9], sizes = [128, 1], strides = [1, 1]} : vector<128x16xi32> to vector<128x1xi32>
    %67 = vector.broadcast %66 : vector<128x1xi32> to vector<128x128xi32>
    %68 = arith.cmpi eq, %67, %1 : vector<128x128xi32>
    %cst_19 = arith.constant 1.000000e+00 : f32
    %cst_20 = arith.constant 0.000000e+00 : f32
    %69 = vector.broadcast %cst_19 : f32 to vector<128x128xf32>
    %70 = vector.broadcast %cst_20 : f32 to vector<128x128xf32>
    %71 = arith.select %68, %69, %70 : vector<128x128xi1>, vector<128x128xf32>
    %72 = arith.addf %65, %71 : vector<128x128xf32>
    %73 = vector.extract_strided_slice %0 {offsets = [0, 10], sizes = [128, 1], strides = [1, 1]} : vector<128x16xi32> to vector<128x1xi32>
    %74 = vector.broadcast %73 : vector<128x1xi32> to vector<128x128xi32>
    %75 = arith.cmpi eq, %74, %1 : vector<128x128xi32>
    %cst_21 = arith.constant 1.000000e+00 : f32
    %cst_22 = arith.constant 0.000000e+00 : f32
    %76 = vector.broadcast %cst_21 : f32 to vector<128x128xf32>
    %77 = vector.broadcast %cst_22 : f32 to vector<128x128xf32>
    %78 = arith.select %75, %76, %77 : vector<128x128xi1>, vector<128x128xf32>
    %79 = arith.addf %72, %78 : vector<128x128xf32>
    %80 = vector.extract_strided_slice %0 {offsets = [0, 11], sizes = [128, 1], strides = [1, 1]} : vector<128x16xi32> to vector<128x1xi32>
    %81 = vector.broadcast %80 : vector<128x1xi32> to vector<128x128xi32>
    %82 = arith.cmpi eq, %81, %1 : vector<128x128xi32>
    %cst_23 = arith.constant 1.000000e+00 : f32
    %cst_24 = arith.constant 0.000000e+00 : f32
    %83 = vector.broadcast %cst_23 : f32 to vector<128x128xf32>
    %84 = vector.broadcast %cst_24 : f32 to vector<128x128xf32>
    %85 = arith.select %82, %83, %84 : vector<128x128xi1>, vector<128x128xf32>
    %86 = arith.addf %79, %85 : vector<128x128xf32>
    %87 = vector.extract_strided_slice %0 {offsets = [0, 12], sizes = [128, 1], strides = [1, 1]} : vector<128x16xi32> to vector<128x1xi32>
    %88 = vector.broadcast %87 : vector<128x1xi32> to vector<128x128xi32>
    %89 = arith.cmpi eq, %88, %1 : vector<128x128xi32>
    %cst_25 = arith.constant 1.000000e+00 : f32
    %cst_26 = arith.constant 0.000000e+00 : f32
    %90 = vector.broadcast %cst_25 : f32 to vector<128x128xf32>
    %91 = vector.broadcast %cst_26 : f32 to vector<128x128xf32>
    %92 = arith.select %89, %90, %91 : vector<128x128xi1>, vector<128x128xf32>
    %93 = arith.addf %86, %92 : vector<128x128xf32>
    %94 = vector.extract_strided_slice %0 {offsets = [0, 13], sizes = [128, 1], strides = [1, 1]} : vector<128x16xi32> to vector<128x1xi32>
    %95 = vector.broadcast %94 : vector<128x1xi32> to vector<128x128xi32>
    %96 = arith.cmpi eq, %95, %1 : vector<128x128xi32>
    %cst_27 = arith.constant 1.000000e+00 : f32
    %cst_28 = arith.constant 0.000000e+00 : f32
    %97 = vector.broadcast %cst_27 : f32 to vector<128x128xf32>
    %98 = vector.broadcast %cst_28 : f32 to vector<128x128xf32>
    %99 = arith.select %96, %97, %98 : vector<128x128xi1>, vector<128x128xf32>
    %100 = arith.addf %93, %99 : vector<128x128xf32>
    %101 = vector.extract_strided_slice %0 {offsets = [0, 14], sizes = [128, 1], strides = [1, 1]} : vector<128x16xi32> to vector<128x1xi32>
    %102 = vector.broadcast %101 : vector<128x1xi32> to vector<128x128xi32>
    %103 = arith.cmpi eq, %102, %1 : vector<128x128xi32>
    %cst_29 = arith.constant 1.000000e+00 : f32
    %cst_30 = arith.constant 0.000000e+00 : f32
    %104 = vector.broadcast %cst_29 : f32 to vector<128x128xf32>
    %105 = vector.broadcast %cst_30 : f32 to vector<128x128xf32>
    %106 = arith.select %103, %104, %105 : vector<128x128xi1>, vector<128x128xf32>
    %107 = arith.addf %100, %106 : vector<128x128xf32>
    %108 = vector.extract_strided_slice %0 {offsets = [0, 15], sizes = [128, 1], strides = [1, 1]} : vector<128x16xi32> to vector<128x1xi32>
    %109 = vector.broadcast %108 : vector<128x1xi32> to vector<128x128xi32>
    %110 = arith.cmpi eq, %109, %1 : vector<128x128xi32>
    %cst_31 = arith.constant 1.000000e+00 : f32
    %cst_32 = arith.constant 0.000000e+00 : f32
    %111 = vector.broadcast %cst_31 : f32 to vector<128x128xf32>
    %112 = vector.broadcast %cst_32 : f32 to vector<128x128xf32>
    %113 = arith.select %110, %111, %112 : vector<128x128xi1>, vector<128x128xf32>
    %114 = arith.addf %107, %113 : vector<128x128xf32>
    %c0_33 = arith.constant 0 : index
    %c0_34 = arith.constant 0 : index
    %115 = vector.load %arg3[%c0_33, %c0_34] : memref<128x128xf32, #tpu.memory_space<vmem>>, vector<128x128xf32>
    %cst_35 = arith.constant dense<0.000000e+00> : vector<128x128xf32>
    %116 = tpu.matmul %114, %115, %cst_35 {dimension_numbers = #tpu.dot_dimension_numbers<[1], [0], [0], [1], [0, 0, 1, 1], [], []>} : vector<128x128xf32>, vector<128x128xf32>, vector<128x128xf32> -> vector<128x128xf32>
    %c0_36 = arith.constant 0 : index
    %c0_37 = arith.constant 0 : index
    %117 = vector.load %arg2[%c0_36, %c0_37] : memref<128x1xf32, #tpu.memory_space<vmem>>, vector<128x1xf32>
    %cst_38 = arith.constant 1.000000e+00 : f32
    %118 = vector.broadcast %cst_38 : f32 to vector<128x1xf32>
    %119 = arith.maximumf %117, %118 : vector<128x1xf32>
    %120 = tpu.reciprocal %119 : vector<128x1xf32> -> vector<128x1xf32>
    %121 = vector.broadcast %120 : vector<128x1xf32> to vector<128x128xf32>
    %122 = arith.mulf %116, %121 : vector<128x128xf32>
    %c0_39 = arith.constant 0 : index
    %c0_40 = arith.constant 0 : index
    %123 = vector.load %arg4[%c0_39, %c0_40] : memref<128x128xf32, #tpu.memory_space<vmem>>, vector<128x128xf32>
    %cst_41 = arith.constant dense<0.000000e+00> : vector<128x128xf32>
    %124 = tpu.matmul %122, %123, %cst_41 {dimension_numbers = #tpu.dot_dimension_numbers<[1], [0], [0], [1], [0, 0, 1, 1], [], []>} : vector<128x128xf32>, vector<128x128xf32>, vector<128x128xf32> -> vector<128x128xf32>
    %c0_42 = arith.constant 0 : index
    %c0_43 = arith.constant 0 : index
    %125 = vector.load %arg5[%c0_42, %c0_43] : memref<1x128xf32, #tpu.memory_space<vmem>>, vector<1x128xf32>
    %126 = vector.broadcast %125 : vector<1x128xf32> to vector<128x128xf32>
    %127 = arith.addf %124, %126 : vector<128x128xf32>
    %cst_44 = arith.constant 0.000000e+00 : f32
    %128 = vector.broadcast %cst_44 : f32 to vector<128x128xf32>
    %129 = arith.maximumf %127, %128 : vector<128x128xf32>
    %c0_45 = arith.constant 0 : index
    %c0_46 = arith.constant 0 : index
    %130 = vector.load %arg6[%c0_45, %c0_46] : memref<128x128xf32, #tpu.memory_space<vmem>>, vector<128x128xf32>
    %cst_47 = arith.constant dense<0.000000e+00> : vector<128x128xf32>
    %131 = tpu.matmul %129, %130, %cst_47 {dimension_numbers = #tpu.dot_dimension_numbers<[1], [0], [0], [1], [0, 0, 1, 1], [], []>} : vector<128x128xf32>, vector<128x128xf32>, vector<128x128xf32> -> vector<128x128xf32>
    %c0_48 = arith.constant 0 : index
    %c0_49 = arith.constant 0 : index
    %132 = vector.load %arg7[%c0_48, %c0_49] : memref<1x128xf32, #tpu.memory_space<vmem>>, vector<1x128xf32>
    %133 = vector.broadcast %132 : vector<1x128xf32> to vector<128x128xf32>
    %134 = arith.addf %131, %133 : vector<128x128xf32>
    %cst_50 = arith.constant 0.000000e+00 : f32
    %135 = vector.broadcast %cst_50 : f32 to vector<128x128xf32>
    %136 = arith.maximumf %134, %135 : vector<128x128xf32>
    %c0_51 = arith.constant 0 : index
    %c0_52 = arith.constant 0 : index
    %137 = vector.load %arg8[%c0_51, %c0_52] : memref<128x128xf32, #tpu.memory_space<vmem>>, vector<128x128xf32>
    tpu.vector_store %arg8[%c0_51, %c0_52], %136 {strides = array<i32>} : memref<128x128xf32, #tpu.memory_space<vmem>>, vector<128x128xf32>,
    return
  }
  func.func @transform_0(%arg0: i32) -> (i32, i32) {
    %c0_i32 = arith.constant 0 : i32
    %c0_i32_0 = arith.constant 0 : i32
    return %arg0, %c0_i32 : i32, i32
  }
  func.func @transform_1(%arg0: i32) -> (i32, i32) {
    %c0_i32 = arith.constant 0 : i32
    %c0_i32_0 = arith.constant 0 : i32
    return %arg0, %c0_i32 : i32, i32
  }
  func.func @transform_2(%arg0: i32) -> (i32, i32) {
    %c0_i32 = arith.constant 0 : i32
    %c0_i32_0 = arith.constant 0 : i32
    %c0_i32_1 = arith.constant 0 : i32
    return %c0_i32, %c0_i32_0 : i32, i32
  }
  func.func @transform_3(%arg0: i32) -> (i32, i32) {
    %c0_i32 = arith.constant 0 : i32
    %c0_i32_0 = arith.constant 0 : i32
    %c0_i32_1 = arith.constant 0 : i32
    return %c0_i32, %c0_i32_0 : i32, i32
  }
  func.func @transform_4(%arg0: i32) -> (i32, i32) {
    %c0_i32 = arith.constant 0 : i32
    %c0_i32_0 = arith.constant 0 : i32
    %c0_i32_1 = arith.constant 0 : i32
    return %c0_i32, %c0_i32_0 : i32, i32
  }
  func.func @transform_5(%arg0: i32) -> (i32, i32) {
    %c0_i32 = arith.constant 0 : i32
    %c0_i32_0 = arith.constant 0 : i32
    %c0_i32_1 = arith.constant 0 : i32
    return %c0_i32, %c0_i32_0 : i32, i32
  }
  func.func @transform_6(%arg0: i32) -> (i32, i32) {
    %c0_i32 = arith.constant 0 : i32
    %c0_i32_0 = arith.constant 0 : i32
    %c0_i32_1 = arith.constant 0 : i32
    return %c0_i32, %c0_i32_0 : i32, i32
  }
  func.func @transform_7(%arg0: i32) -> (i32, i32) {
    %c0_i32 = arith.constant 0 : i32
    %c0_i32_0 = arith.constant 0 : i32
    return %arg0, %c0_i32 : i32, i32
  }
}

</mosaic_0001>

<llo_original>
// kernel: tpu_custom_call.1
$region0: #{tpu_custom_call.1}
  #allocation0 [shape = 'u32[]', space=smem, size = 0x4, offset = 0x4, fixed_abs, tag = 'smem constant byte address 0x4 - core index']
  #allocation1 [shape = 'u32[144,128]{1,0:T(1,128)}', space=vmem, size = 0x12000, scoped, tag = 'internal scratch']
  %s0 = inlined_call_operand.vmem [shape: s32[128,16], index: 0, kind: input, shape index: {}]
  %s1 = inlined_call_operand.vmem [shape: f32[128,1], index: 1, kind: input, shape index: {}]
  %s2 = inlined_call_operand.vmem [shape: f32[128,128], index: 2, kind: input, shape index: {}]
  %s3 = inlined_call_operand.vmem [shape: f32[128,128], index: 3, kind: input, shape index: {}]
  %s4 = inlined_call_operand.vmem [shape: f32[1,128], index: 4, kind: input, shape index: {}]
  %s5 = inlined_call_operand.hbm [shape: f32[128,128], index: 5, kind: input, shape index: {}]
  %s6 = inlined_call_operand.vmem [shape: f32[1,128], index: 6, kind: input, shape index: {}]
  %s7 = inlined_call_operand.hbm [shape: f32[128,128], index: 7, kind: output, shape index: {}]
  %s8 = sld [smem:[#allocation0]]
  $region42: #{tpu_custom_call.1} parent=0
    _
  %s10 = ssub.s32 1, %s8
  %s11 = scalar_select 0, %s10, %s8
  $region1: #{tpu_custom_call.1} parent=0
    #allocation2 [shape = 'u8[65536]{0}', space=vmem, size = 0x10000, scoped, tag = 'input window, operand 5, single buffered']
    #allocation3 [shape = 's32[1]{0}', space=sflag, size = 0x4, scoped, tag = 'scoped memory for tpu_custom_call.1']
    #allocation4 [shape = 's32[1]{0}', space=sflag, size = 0x4, scoped, tag = 'scoped memory for tpu_custom_call.1']
    #allocation5 [shape = 'u8[65536]{0}', space=vmem, size = 0x10000, scoped, tag = 'output window, operand 0, single buffered']
    %12 = vsyncpa [#allocation3], 0
    %13 = vsyncpa [#allocation4], 0
    // Predicated region
    $region2: #{tpu_custom_call.1} parent=1 // pred_check
      _
    $region3: #{tpu_custom_call.1} parent=1 // pred_check_branch
      %15 = sbr.rel (0) target = $region5
    $region4: #{tpu_custom_call.1} parent=1 // pred_region
      _
    $region5: #{tpu_custom_call.1} parent=1 // pred_fallthru
      _
    // Predicated region
    $region6: #{tpu_custom_call.1} parent=1 // pred_check
      _
    $region7: #{tpu_custom_call.1} parent=1 // pred_check_branch
      %17 = sbr.rel (0) target = $region9
    $region8: #{tpu_custom_call.1} parent=1 // pred_region
      _
    $region9: #{tpu_custom_call.1} parent=1 // pred_fallthru
      _
    // Predicated region
    $region10: #{tpu_custom_call.1} parent=1 // pred_check
      _
    $region11: #{tpu_custom_call.1} parent=1 // pred_check_branch
      %19 = sbr.rel (0) target = $region13
    $region12: #{tpu_custom_call.1} parent=1 // pred_region
      _
    $region13: #{tpu_custom_call.1} parent=1 // pred_fallthru
      _
    // Predicated region
    $region14: #{tpu_custom_call.1} parent=1 // pred_check
      _
    $region15: #{tpu_custom_call.1} parent=1 // pred_check_branch
      %21 = sbr.rel (0) target = $region17
    $region16: #{tpu_custom_call.1} parent=1 // pred_region
      _
    $region17: #{tpu_custom_call.1} parent=1 // pred_fallthru
      _
    // Predicated region
    $region18: #{tpu_custom_call.1} parent=1 // pred_check
      _
    $region19: #{tpu_custom_call.1} parent=1 // pred_check_branch
      %23 = sbr.rel (0) target = $region21
    $region20: #{tpu_custom_call.1} parent=1 // pred_region
      _
    $region21: #{tpu_custom_call.1} parent=1 // pred_fallthru
      _
    // Predicated region
    $region22: #{tpu_custom_call.1} parent=1 // pred_check
      _
    $region23: #{tpu_custom_call.1} parent=1 // pred_check_branch
      %25 = sbr.rel (0) target = $region25
    $region24: #{tpu_custom_call.1} parent=1 // pred_region
      %s27 = ssub.s32 2048, 2048
      %28 = vsyncadd [#allocation3], %s27
      %s29 = sshll.u32 [#allocation2], 4
      %s30 = int_to_ptr.vmem [resolvable:$true] %s29
      %35 = dma.hbm_to_vmem [thread:$0]  %s5, 2048, %s30, [#allocation3], 128, 128, 8
    $region25: #{tpu_custom_call.1} parent=1 // pred_fallthru
      _
    // Predicated region
    $region26: #{tpu_custom_call.1} parent=1 // pred_check
      _
    $region27: #{tpu_custom_call.1} parent=1 // pred_check_branch
      %37 = sbr.rel (0) target = $region29
    $region28: #{tpu_custom_call.1} parent=1 // pred_region
      _
    $region29: #{tpu_custom_call.1} parent=1 // pred_fallthru
      _
    // Predicated region
    $region30: #{tpu_custom_call.1} parent=1 // pred_check
      _
    $region31: #{tpu_custom_call.1} parent=1 // pred_check_branch
      %39 = sbr.rel (0) target = $region33
    $region32: #{tpu_custom_call.1} parent=1 // pred_region
      %40 = dma.done [#allocation3], 2048
    $region33: #{tpu_custom_call.1} parent=1 // pred_fallthru
      _
    %v41 = vld [vmem:[%s0] sm:$0xff]
    %v42 = vld [vmem:[%s0 + $0x8] sm:$0xff]
    %v43 = vld [vmem:[%s0 + $0x10] sm:$0xff]
    %v44 = vld [vmem:[%s0 + $0x18] sm:$0xff]
    %v45 = vld [vmem:[%s0 + $0x20] sm:$0xff]
    %v46 = vld [vmem:[%s0 + $0x28] sm:$0xff]
    %v47 = vld [vmem:[%s0 + $0x30] sm:$0xff]
    %v48 = vld [vmem:[%s0 + $0x38] sm:$0xff]
    %v49 = vld [vmem:[%s0 + $0x40] sm:$0xff]
    %v50 = vld [vmem:[%s0 + $0x48] sm:$0xff]
    %v51 = vld [vmem:[%s0 + $0x50] sm:$0xff]
    %v52 = vld [vmem:[%s0 + $0x58] sm:$0xff]
    %v53 = vld [vmem:[%s0 + $0x60] sm:$0xff]
    %v54 = vld [vmem:[%s0 + $0x68] sm:$0xff]
    %v55 = vld [vmem:[%s0 + $0x70] sm:$0xff]
    %v56 = vld [vmem:[%s0 + $0x78] sm:$0xff]
    %v57 = vlaneseq
    %v58 = vand.u32 %v57, 127
    %59 = vset.pattern.permute.xlu0 0
    %60 = vperm.xlu0 %59, %v41
    %v61 = vpop.permute.xlu0 %60
    %62 = vset.pattern.permute.xlu0 0
    %63 = vperm.xlu0 %62, %v42
    %v64 = vpop.permute.xlu0 %63
    %65 = vset.pattern.permute.xlu0 0
    %66 = vperm.xlu0 %65, %v43
    %v67 = vpop.permute.xlu0 %66
    %68 = vset.pattern.permute.xlu0 0
    %69 = vperm.xlu0 %68, %v44
    %v70 = vpop.permute.xlu0 %69
    %71 = vset.pattern.permute.xlu0 0
    %72 = vperm.xlu0 %71, %v45
    %v73 = vpop.permute.xlu0 %72
    %74 = vset.pattern.permute.xlu0 0
    %75 = vperm.xlu0 %74, %v46
    %v76 = vpop.permute.xlu0 %75
    %77 = vset.pattern.permute.xlu0 0
    %78 = vperm.xlu0 %77, %v47
    %v79 = vpop.permute.xlu0 %78
    %80 = vset.pattern.permute.xlu0 0
    %81 = vperm.xlu0 %80, %v48
    %v82 = vpop.permute.xlu0 %81
    %83 = vset.pattern.permute.xlu0 0
    %84 = vperm.xlu0 %83, %v49
    %v85 = vpop.permute.xlu0 %84
    %86 = vset.pattern.permute.xlu0 0
    %87 = vperm.xlu0 %86, %v50
    %v88 = vpop.permute.xlu0 %87
    %89 = vset.pattern.permute.xlu0 0
    %90 = vperm.xlu0 %89, %v51
    %v91 = vpop.permute.xlu0 %90
    %92 = vset.pattern.permute.xlu0 0
    %93 = vperm.xlu0 %92, %v52
    %v94 = vpop.permute.xlu0 %93
    %95 = vset.pattern.permute.xlu0 0
    %96 = vperm.xlu0 %95, %v53
    %v97 = vpop.permute.xlu0 %96
    %98 = vset.pattern.permute.xlu0 0
    %99 = vperm.xlu0 %98, %v54
    %v100 = vpop.permute.xlu0 %99
    %101 = vset.pattern.permute.xlu0 0
    %102 = vperm.xlu0 %101, %v55
    %v103 = vpop.permute.xlu0 %102
    %104 = vset.pattern.permute.xlu0 0
    %105 = vperm.xlu0 %104, %v56
    %v106 = vpop.permute.xlu0 %105
    %vm107 = vcmp.eq.s32.totalorder %v61, %v58
    %vm108 = vcmp.eq.s32.totalorder %v64, %v58
    %vm109 = vcmp.eq.s32.totalorder %v67, %v58
    %vm110 = vcmp.eq.s32.totalorder %v70, %v58
    %vm111 = vcmp.eq.s32.totalorder %v73, %v58
    %vm112 = vcmp.eq.s32.totalorder %v76, %v58
    %vm113 = vcmp.eq.s32.totalorder %v79, %v58
    %vm114 = vcmp.eq.s32.totalorder %v82, %v58
    %vm115 = vcmp.eq.s32.totalorder %v85, %v58
    %vm116 = vcmp.eq.s32.totalorder %v88, %v58
    %vm117 = vcmp.eq.s32.totalorder %v91, %v58
    %vm118 = vcmp.eq.s32.totalorder %v94, %v58
    %vm119 = vcmp.eq.s32.totalorder %v97, %v58
    %vm120 = vcmp.eq.s32.totalorder %v100, %v58
    %vm121 = vcmp.eq.s32.totalorder %v103, %v58
    %vm122 = vcmp.eq.s32.totalorder %v106, %v58
    %v123 = vsel %vm107, 1.0, 0.0
    %v124 = vsel %vm108, 1.0, 0.0
    %v125 = vsel %vm109, 1.0, 0.0
    %v126 = vsel %vm110, 1.0, 0.0
    %v127 = vsel %vm111, 1.0, 0.0
    %v128 = vsel %vm112, 1.0, 0.0
    %v129 = vsel %vm113, 1.0, 0.0
    %v130 = vsel %vm114, 1.0, 0.0
    %v131 = vsel %vm115, 1.0, 0.0
    %v132 = vsel %vm116, 1.0, 0.0
    %v133 = vsel %vm117, 1.0, 0.0
    %v134 = vsel %vm118, 1.0, 0.0
    %v135 = vsel %vm119, 1.0, 0.0
    %v136 = vsel %vm120, 1.0, 0.0
    %v137 = vsel %vm121, 1.0, 0.0
    %v138 = vsel %vm122, 1.0, 0.0
    %v139 = vadd.f32 %v123, 0.0
    %v140 = vadd.f32 %v124, 0.0
    %v141 = vadd.f32 %v125, 0.0
    %v142 = vadd.f32 %v126, 0.0
    %v143 = vadd.f32 %v127, 0.0
    %v144 = vadd.f32 %v128, 0.0
    %v145 = vadd.f32 %v129, 0.0
    %v146 = vadd.f32 %v130, 0.0
    %v147 = vadd.f32 %v131, 0.0
    %v148 = vadd.f32 %v132, 0.0
    %v149 = vadd.f32 %v133, 0.0
    %v150 = vadd.f32 %v134, 0.0
    %v151 = vadd.f32 %v135, 0.0
    %v152 = vadd.f32 %v136, 0.0
    %v153 = vadd.f32 %v137, 0.0
    %v154 = vadd.f32 %v138, 0.0
    %155 = vset.pattern.permute.xlu0 1
    %156 = vperm.xlu0 %155, %v41
    %v157 = vpop.permute.xlu0 %156
    %158 = vset.pattern.permute.xlu0 1
    %159 = vperm.xlu0 %158, %v42
    %v160 = vpop.permute.xlu0 %159
    %161 = vset.pattern.permute.xlu0 1
    %162 = vperm.xlu0 %161, %v43
    %v163 = vpop.permute.xlu0 %162
    %164 = vset.pattern.permute.xlu0 1
    %165 = vperm.xlu0 %164, %v44
    %v166 = vpop.permute.xlu0 %165
    %167 = vset.pattern.permute.xlu0 1
    %168 = vperm.xlu0 %167, %v45
    %v169 = vpop.permute.xlu0 %168
    %170 = vset.pattern.permute.xlu0 1
    %171 = vperm.xlu0 %170, %v46
    %v172 = vpop.permute.xlu0 %171
    %173 = vset.pattern.permute.xlu0 1
    %174 = vperm.xlu0 %173, %v47
    %v175 = vpop.permute.xlu0 %174
    %176 = vset.pattern.permute.xlu0 1
    %177 = vperm.xlu0 %176, %v48
    %v178 = vpop.permute.xlu0 %177
    %179 = vset.pattern.permute.xlu0 1
    %180 = vperm.xlu0 %179, %v49
    %v181 = vpop.permute.xlu0 %180
    %182 = vset.pattern.permute.xlu0 1
    %183 = vperm.xlu0 %182, %v50
    %v184 = vpop.permute.xlu0 %183
    %185 = vset.pattern.permute.xlu0 1
    %186 = vperm.xlu0 %185, %v51
    %v187 = vpop.permute.xlu0 %186
    %188 = vset.pattern.permute.xlu0 1
    %189 = vperm.xlu0 %188, %v52
    %v190 = vpop.permute.xlu0 %189
    %191 = vset.pattern.permute.xlu0 1
    %192 = vperm.xlu0 %191, %v53
    %v193 = vpop.permute.xlu0 %192
    %194 = vset.pattern.permute.xlu0 1
    %195 = vperm.xlu0 %194, %v54
    %v196 = vpop.permute.xlu0 %195
    %197 = vset.pattern.permute.xlu0 1
    %198 = vperm.xlu0 %197, %v55
    %v199 = vpop.permute.xlu0 %198
    %200 = vset.pattern.permute.xlu0 1
    %201 = vperm.xlu0 %200, %v56
    %v202 = vpop.permute.xlu0 %201
    %vm203 = vcmp.eq.s32.totalorder %v157, %v58
    %vm204 = vcmp.eq.s32.totalorder %v160, %v58
    %vm205 = vcmp.eq.s32.totalorder %v163, %v58
    %vm206 = vcmp.eq.s32.totalorder %v166, %v58
    %vm207 = vcmp.eq.s32.totalorder %v169, %v58
    %vm208 = vcmp.eq.s32.totalorder %v172, %v58
    %vm209 = vcmp.eq.s32.totalorder %v175, %v58
    %vm210 = vcmp.eq.s32.totalorder %v178, %v58
    %vm211 = vcmp.eq.s32.totalorder %v181, %v58
    %vm212 = vcmp.eq.s32.totalorder %v184, %v58
    %vm213 = vcmp.eq.s32.totalorder %v187, %v58
    %vm214 = vcmp.eq.s32.totalorder %v190, %v58
    %vm215 = vcmp.eq.s32.totalorder %v193, %v58
    %vm216 = vcmp.eq.s32.totalorder %v196, %v58
    %vm217 = vcmp.eq.s32.totalorder %v199, %v58
    %vm218 = vcmp.eq.s32.totalorder %v202, %v58
    %v219 = vsel %vm203, 1.0, 0.0
    %v220 = vsel %vm204, 1.0, 0.0
    %v221 = vsel %vm205, 1.0, 0.0
    %v222 = vsel %vm206, 1.0, 0.0
    %v223 = vsel %vm207, 1.0, 0.0
    %v224 = vsel %vm208, 1.0, 0.0
    %v225 = vsel %vm209, 1.0, 0.0
    %v226 = vsel %vm210, 1.0, 0.0
    %v227 = vsel %vm211, 1.0, 0.0
    %v228 = vsel %vm212, 1.0, 0.0
    %v229 = vsel %vm213, 1.0, 0.0
    %v230 = vsel %vm214, 1.0, 0.0
    %v231 = vsel %vm215, 1.0, 0.0
    %v232 = vsel %vm216, 1.0, 0.0
    %v233 = vsel %vm217, 1.0, 0.0
    %v234 = vsel %vm218, 1.0, 0.0
    %v235 = vadd.f32 %v139, %v219
    %v236 = vadd.f32 %v140, %v220
    %v237 = vadd.f32 %v141, %v221
    %v238 = vadd.f32 %v142, %v222
    %v239 = vadd.f32 %v143, %v223
    %v240 = vadd.f32 %v144, %v224
    %v241 = vadd.f32 %v145, %v225
    %v242 = vadd.f32 %v146, %v226
    %v243 = vadd.f32 %v147, %v227
    %v244 = vadd.f32 %v148, %v228
    %v245 = vadd.f32 %v149, %v229
    %v246 = vadd.f32 %v150, %v230
    %v247 = vadd.f32 %v151, %v231
    %v248 = vadd.f32 %v152, %v232
    %v249 = vadd.f32 %v153, %v233
    %v250 = vadd.f32 %v154, %v234
    %251 = vset.pattern.permute.xlu0 2
    %252 = vperm.xlu0 %251, %v41
    %v253 = vpop.permute.xlu0 %252
    %254 = vset.pattern.permute.xlu0 2
    %255 = vperm.xlu0 %254, %v42
    %v256 = vpop.permute.xlu0 %255
    %257 = vset.pattern.permute.xlu0 2
    %258 = vperm.xlu0 %257, %v43
    %v259 = vpop.permute.xlu0 %258
    %260 = vset.pattern.permute.xlu0 2
    %261 = vperm.xlu0 %260, %v44
    %v262 = vpop.permute.xlu0 %261
    %263 = vset.pattern.permute.xlu0 2
    %264 = vperm.xlu0 %263, %v45
    %v265 = vpop.permute.xlu0 %264
    %266 = vset.pattern.permute.xlu0 2
    %267 = vperm.xlu0 %266, %v46
    %v268 = vpop.permute.xlu0 %267
    %269 = vset.pattern.permute.xlu0 2
    %270 = vperm.xlu0 %269, %v47
    %v271 = vpop.permute.xlu0 %270
    %272 = vset.pattern.permute.xlu0 2
    %273 = vperm.xlu0 %272, %v48
    %v274 = vpop.permute.xlu0 %273
    %275 = vset.pattern.permute.xlu0 2
    %276 = vperm.xlu0 %275, %v49
    %v277 = vpop.permute.xlu0 %276
    %278 = vset.pattern.permute.xlu0 2
    %279 = vperm.xlu0 %278, %v50
    %v280 = vpop.permute.xlu0 %279
    %281 = vset.pattern.permute.xlu0 2
    %282 = vperm.xlu0 %281, %v51
    %v283 = vpop.permute.xlu0 %282
    %284 = vset.pattern.permute.xlu0 2
    %285 = vperm.xlu0 %284, %v52
    %v286 = vpop.permute.xlu0 %285
    %287 = vset.pattern.permute.xlu0 2
    %288 = vperm.xlu0 %287, %v53
    %v289 = vpop.permute.xlu0 %288
    %290 = vset.pattern.permute.xlu0 2
    %291 = vperm.xlu0 %290, %v54
    %v292 = vpop.permute.xlu0 %291
    %293 = vset.pattern.permute.xlu0 2
    %294 = vperm.xlu0 %293, %v55
    %v295 = vpop.permute.xlu0 %294
    %296 = vset.pattern.permute.xlu0 2
    %297 = vperm.xlu0 %296, %v56
    %v298 = vpop.permute.xlu0 %297
    %vm299 = vcmp.eq.s32.totalorder %v253, %v58
    %vm300 = vcmp.eq.s32.totalorder %v256, %v58
    %vm301 = vcmp.eq.s32.totalorder %v259, %v58
    %vm302 = vcmp.eq.s32.totalorder %v262, %v58
    %vm303 = vcmp.eq.s32.totalorder %v265, %v58
    %vm304 = vcmp.eq.s32.totalorder %v268, %v58
    %vm305 = vcmp.eq.s32.totalorder %v271, %v58
    %vm306 = vcmp.eq.s32.totalorder %v274, %v58
    %vm307 = vcmp.eq.s32.totalorder %v277, %v58
    %vm308 = vcmp.eq.s32.totalorder %v280, %v58
    %vm309 = vcmp.eq.s32.totalorder %v283, %v58
    %vm310 = vcmp.eq.s32.totalorder %v286, %v58
    %vm311 = vcmp.eq.s32.totalorder %v289, %v58
    %vm312 = vcmp.eq.s32.totalorder %v292, %v58
    %vm313 = vcmp.eq.s32.totalorder %v295, %v58
    %vm314 = vcmp.eq.s32.totalorder %v298, %v58
    %v315 = vsel %vm299, 1.0, 0.0
    %v316 = vsel %vm300, 1.0, 0.0
    %v317 = vsel %vm301, 1.0, 0.0
    %v318 = vsel %vm302, 1.0, 0.0
    %v319 = vsel %vm303, 1.0, 0.0
    %v320 = vsel %vm304, 1.0, 0.0
    %v321 = vsel %vm305, 1.0, 0.0
    %v322 = vsel %vm306, 1.0, 0.0
    %v323 = vsel %vm307, 1.0, 0.0
    %v324 = vsel %vm308, 1.0, 0.0
    %v325 = vsel %vm309, 1.0, 0.0
    %v326 = vsel %vm310, 1.0, 0.0
    %v327 = vsel %vm311, 1.0, 0.0
    %v328 = vsel %vm312, 1.0, 0.0
    %v329 = vsel %vm313, 1.0, 0.0
    %v330 = vsel %vm314, 1.0, 0.0
    %v331 = vadd.f32 %v235, %v315
    %v332 = vadd.f32 %v236, %v316
    %v333 = vadd.f32 %v237, %v317
    %v334 = vadd.f32 %v238, %v318
    %v335 = vadd.f32 %v239, %v319
    %v336 = vadd.f32 %v240, %v320
    %v337 = vadd.f32 %v241, %v321
    %v338 = vadd.f32 %v242, %v322
    %v339 = vadd.f32 %v243, %v323
    %v340 = vadd.f32 %v244, %v324
    %v341 = vadd.f32 %v245, %v325
    %v342 = vadd.f32 %v246, %v326
    %v343 = vadd.f32 %v247, %v327
    %v344 = vadd.f32 %v248, %v328
    %v345 = vadd.f32 %v249, %v329
    %v346 = vadd.f32 %v250, %v330
    %347 = vset.pattern.permute.xlu0 3
    %348 = vperm.xlu0 %347, %v41
    %v349 = vpop.permute.xlu0 %348
    %350 = vset.pattern.permute.xlu0 3
    %351 = vperm.xlu0 %350, %v42
    %v352 = vpop.permute.xlu0 %351
    %353 = vset.pattern.permute.xlu0 3
    %354 = vperm.xlu0 %353, %v43
    %v355 = vpop.permute.xlu0 %354
    %356 = vset.pattern.permute.xlu0 3
    %357 = vperm.xlu0 %356, %v44
    %v358 = vpop.permute.xlu0 %357
    %359 = vset.pattern.permute.xlu0 3
    %360 = vperm.xlu0 %359, %v45
    %v361 = vpop.permute.xlu0 %360
    %362 = vset.pattern.permute.xlu0 3
    %363 = vperm.xlu0 %362, %v46
    %v364 = vpop.permute.xlu0 %363
    %365 = vset.pattern.permute.xlu0 3
    %366 = vperm.xlu0 %365, %v47
    %v367 = vpop.permute.xlu0 %366
    %368 = vset.pattern.permute.xlu0 3
    %369 = vperm.xlu0 %368, %v48
    %v370 = vpop.permute.xlu0 %369
    %371 = vset.pattern.permute.xlu0 3
    %372 = vperm.xlu0 %371, %v49
    %v373 = vpop.permute.xlu0 %372
    %374 = vset.pattern.permute.xlu0 3
    %375 = vperm.xlu0 %374, %v50
    %v376 = vpop.permute.xlu0 %375
    %377 = vset.pattern.permute.xlu0 3
    %378 = vperm.xlu0 %377, %v51
    %v379 = vpop.permute.xlu0 %378
    %380 = vset.pattern.permute.xlu0 3
    %381 = vperm.xlu0 %380, %v52
    %v382 = vpop.permute.xlu0 %381
    %383 = vset.pattern.permute.xlu0 3
    %384 = vperm.xlu0 %383, %v53
    %v385 = vpop.permute.xlu0 %384
    %386 = vset.pattern.permute.xlu0 3
    %387 = vperm.xlu0 %386, %v54
    %v388 = vpop.permute.xlu0 %387
    %389 = vset.pattern.permute.xlu0 3
    %390 = vperm.xlu0 %389, %v55
    %v391 = vpop.permute.xlu0 %390
    %392 = vset.pattern.permute.xlu0 3
    %393 = vperm.xlu0 %392, %v56
    %v394 = vpop.permute.xlu0 %393
    %vm395 = vcmp.eq.s32.totalorder %v349, %v58
    %vm396 = vcmp.eq.s32.totalorder %v352, %v58
    %vm397 = vcmp.eq.s32.totalorder %v355, %v58
    %vm398 = vcmp.eq.s32.totalorder %v358, %v58
    %vm399 = vcmp.eq.s32.totalorder %v361, %v58
    %vm400 = vcmp.eq.s32.totalorder %v364, %v58
    %vm401 = vcmp.eq.s32.totalorder %v367, %v58
    %vm402 = vcmp.eq.s32.totalorder %v370, %v58
    %vm403 = vcmp.eq.s32.totalorder %v373, %v58
    %vm404 = vcmp.eq.s32.totalorder %v376, %v58
    %vm405 = vcmp.eq.s32.totalorder %v379, %v58
    %vm406 = vcmp.eq.s32.totalorder %v382, %v58
    %vm407 = vcmp.eq.s32.totalorder %v385, %v58
    %vm408 = vcmp.eq.s32.totalorder %v388, %v58
    %vm409 = vcmp.eq.s32.totalorder %v391, %v58
    %vm410 = vcmp.eq.s32.totalorder %v394, %v58
    %v411 = vsel %vm395, 1.0, 0.0
    %v412 = vsel %vm396, 1.0, 0.0
    %v413 = vsel %vm397, 1.0, 0.0
    %v414 = vsel %vm398, 1.0, 0.0
    %v415 = vsel %vm399, 1.0, 0.0
    %v416 = vsel %vm400, 1.0, 0.0
    %v417 = vsel %vm401, 1.0, 0.0
    %v418 = vsel %vm402, 1.0, 0.0
    %v419 = vsel %vm403, 1.0, 0.0
    %v420 = vsel %vm404, 1.0, 0.0
    %v421 = vsel %vm405, 1.0, 0.0
    %v422 = vsel %vm406, 1.0, 0.0
    %v423 = vsel %vm407, 1.0, 0.0
    %v424 = vsel %vm408, 1.0, 0.0
    %v425 = vsel %vm409, 1.0, 0.0
    %v426 = vsel %vm410, 1.0, 0.0
    %v427 = vadd.f32 %v331, %v411
    %v428 = vadd.f32 %v332, %v412
    %v429 = vadd.f32 %v333, %v413
    %v430 = vadd.f32 %v334, %v414
    %v431 = vadd.f32 %v335, %v415
    %v432 = vadd.f32 %v336, %v416
    %v433 = vadd.f32 %v337, %v417
    %v434 = vadd.f32 %v338, %v418
    %v435 = vadd.f32 %v339, %v419
    %v436 = vadd.f32 %v340, %v420
    %v437 = vadd.f32 %v341, %v421
    %v438 = vadd.f32 %v342, %v422
    %v439 = vadd.f32 %v343, %v423
    %v440 = vadd.f32 %v344, %v424
    %v441 = vadd.f32 %v345, %v425
    %v442 = vadd.f32 %v346, %v426
    %443 = vset.pattern.permute.xlu0 4
    %444 = vperm.xlu0 %443, %v41
    %v445 = vpop.permute.xlu0 %444
    %446 = vset.pattern.permute.xlu0 4
    %447 = vperm.xlu0 %446, %v42
    %v448 = vpop.permute.xlu0 %447
    %449 = vset.pattern.permute.xlu0 4
    %450 = vperm.xlu0 %449, %v43
    %v451 = vpop.permute.xlu0 %450
    %452 = vset.pattern.permute.xlu0 4
    %453 = vperm.xlu0 %452, %v44
    %v454 = vpop.permute.xlu0 %453
    %455 = vset.pattern.permute.xlu0 4
    %456 = vperm.xlu0 %455, %v45
    %v457 = vpop.permute.xlu0 %456
    %458 = vset.pattern.permute.xlu0 4
    %459 = vperm.xlu0 %458, %v46
    %v460 = vpop.permute.xlu0 %459
    %461 = vset.pattern.permute.xlu0 4
    %462 = vperm.xlu0 %461, %v47
    %v463 = vpop.permute.xlu0 %462
    %464 = vset.pattern.permute.xlu0 4
    %465 = vperm.xlu0 %464, %v48
    %v466 = vpop.permute.xlu0 %465
    %467 = vset.pattern.permute.xlu0 4
    %468 = vperm.xlu0 %467, %v49
    %v469 = vpop.permute.xlu0 %468
    %470 = vset.pattern.permute.xlu0 4
    %471 = vperm.xlu0 %470, %v50
    %v472 = vpop.permute.xlu0 %471
    %473 = vset.pattern.permute.xlu0 4
    %474 = vperm.xlu0 %473, %v51
    %v475 = vpop.permute.xlu0 %474
    %476 = vset.pattern.permute.xlu0 4
    %477 = vperm.xlu0 %476, %v52
    %v478 = vpop.permute.xlu0 %477
    %479 = vset.pattern.permute.xlu0 4
    %480 = vperm.xlu0 %479, %v53
    %v481 = vpop.permute.xlu0 %480
    %482 = vset.pattern.permute.xlu0 4
    %483 = vperm.xlu0 %482, %v54
    %v484 = vpop.permute.xlu0 %483
    %485 = vset.pattern.permute.xlu0 4
    %486 = vperm.xlu0 %485, %v55
    %v487 = vpop.permute.xlu0 %486
    %488 = vset.pattern.permute.xlu0 4
    %489 = vperm.xlu0 %488, %v56
    %v490 = vpop.permute.xlu0 %489
    %vm491 = vcmp.eq.s32.totalorder %v445, %v58
    %vm492 = vcmp.eq.s32.totalorder %v448, %v58
    %vm493 = vcmp.eq.s32.totalorder %v451, %v58
    %vm494 = vcmp.eq.s32.totalorder %v454, %v58
    %vm495 = vcmp.eq.s32.totalorder %v457, %v58
    %vm496 = vcmp.eq.s32.totalorder %v460, %v58
    %vm497 = vcmp.eq.s32.totalorder %v463, %v58
    %vm498 = vcmp.eq.s32.totalorder %v466, %v58
    %vm499 = vcmp.eq.s32.totalorder %v469, %v58
    %vm500 = vcmp.eq.s32.totalorder %v472, %v58
    %vm501 = vcmp.eq.s32.totalorder %v475, %v58
    %vm502 = vcmp.eq.s32.totalorder %v478, %v58
    %vm503 = vcmp.eq.s32.totalorder %v481, %v58
    %vm504 = vcmp.eq.s32.totalorder %v484, %v58
    %vm505 = vcmp.eq.s32.totalorder %v487, %v58
    %vm506 = vcmp.eq.s32.totalorder %v490, %v58
    %v507 = vsel %vm491, 1.0, 0.0
    %v508 = vsel %vm492, 1.0, 0.0
    %v509 = vsel %vm493, 1.0, 0.0
    %v510 = vsel %vm494, 1.0, 0.0
    %v511 = vsel %vm495, 1.0, 0.0
    %v512 = vsel %vm496, 1.0, 0.0
    %v513 = vsel %vm497, 1.0, 0.0
    %v514 = vsel %vm498, 1.0, 0.0
    %v515 = vsel %vm499, 1.0, 0.0
    %v516 = vsel %vm500, 1.0, 0.0
    %v517 = vsel %vm501, 1.0, 0.0
    %v518 = vsel %vm502, 1.0, 0.0
    %v519 = vsel %vm503, 1.0, 0.0
    %v520 = vsel %vm504, 1.0, 0.0
    %v521 = vsel %vm505, 1.0, 0.0
    %v522 = vsel %vm506, 1.0, 0.0
    %v523 = vadd.f32 %v427, %v507
    %v524 = vadd.f32 %v428, %v508
    %v525 = vadd.f32 %v429, %v509
    %v526 = vadd.f32 %v430, %v510
    %v527 = vadd.f32 %v431, %v511
    %v528 = vadd.f32 %v432, %v512
    %v529 = vadd.f32 %v433, %v513
    %v530 = vadd.f32 %v434, %v514
    %v531 = vadd.f32 %v435, %v515
    %v532 = vadd.f32 %v436, %v516
    %v533 = vadd.f32 %v437, %v517
    %v534 = vadd.f32 %v438, %v518
    %v535 = vadd.f32 %v439, %v519
    %v536 = vadd.f32 %v440, %v520
    %v537 = vadd.f32 %v441, %v521
    %v538 = vadd.f32 %v442, %v522
    %539 = vset.pattern.permute.xlu0 5
    %540 = vperm.xlu0 %539, %v41
    %v541 = vpop.permute.xlu0 %540
    %542 = vset.pattern.permute.xlu0 5
    %543 = vperm.xlu0 %542, %v42
    %v544 = vpop.permute.xlu0 %543
    %545 = vset.pattern.permute.xlu0 5
    %546 = vperm.xlu0 %545, %v43
    %v547 = vpop.permute.xlu0 %546
    %548 = vset.pattern.permute.xlu0 5
    %549 = vperm.xlu0 %548, %v44
    %v550 = vpop.permute.xlu0 %549
    %551 = vset.pattern.permute.xlu0 5
    %552 = vperm.xlu0 %551, %v45
    %v553 = vpop.permute.xlu0 %552
    %554 = vset.pattern.permute.xlu0 5
    %555 = vperm.xlu0 %554, %v46
    %v556 = vpop.permute.xlu0 %555
    %557 = vset.pattern.permute.xlu0 5
    %558 = vperm.xlu0 %557, %v47
    %v559 = vpop.permute.xlu0 %558
    %560 = vset.pattern.permute.xlu0 5
    %561 = vperm.xlu0 %560, %v48
    %v562 = vpop.permute.xlu0 %561
    %563 = vset.pattern.permute.xlu0 5
    %564 = vperm.xlu0 %563, %v49
    %v565 = vpop.permute.xlu0 %564
    %566 = vset.pattern.permute.xlu0 5
    %567 = vperm.xlu0 %566, %v50
    %v568 = vpop.permute.xlu0 %567
    %569 = vset.pattern.permute.xlu0 5
    %570 = vperm.xlu0 %569, %v51
    %v571 = vpop.permute.xlu0 %570
    %572 = vset.pattern.permute.xlu0 5
    %573 = vperm.xlu0 %572, %v52
    %v574 = vpop.permute.xlu0 %573
    %575 = vset.pattern.permute.xlu0 5
    %576 = vperm.xlu0 %575, %v53
    %v577 = vpop.permute.xlu0 %576
    %578 = vset.pattern.permute.xlu0 5
    %579 = vperm.xlu0 %578, %v54
    %v580 = vpop.permute.xlu0 %579
    %581 = vset.pattern.permute.xlu0 5
    %582 = vperm.xlu0 %581, %v55
    %v583 = vpop.permute.xlu0 %582
    %584 = vset.pattern.permute.xlu0 5
    %585 = vperm.xlu0 %584, %v56
    %v586 = vpop.permute.xlu0 %585
    %vm587 = vcmp.eq.s32.totalorder %v541, %v58
    %vm588 = vcmp.eq.s32.totalorder %v544, %v58
    %vm589 = vcmp.eq.s32.totalorder %v547, %v58
    %vm590 = vcmp.eq.s32.totalorder %v550, %v58
    %vm591 = vcmp.eq.s32.totalorder %v553, %v58
    %vm592 = vcmp.eq.s32.totalorder %v556, %v58
    %vm593 = vcmp.eq.s32.totalorder %v559, %v58
    %vm594 = vcmp.eq.s32.totalorder %v562, %v58
    %vm595 = vcmp.eq.s32.totalorder %v565, %v58
    %vm596 = vcmp.eq.s32.totalorder %v568, %v58
    %vm597 = vcmp.eq.s32.totalorder %v571, %v58
    %vm598 = vcmp.eq.s32.totalorder %v574, %v58
    %vm599 = vcmp.eq.s32.totalorder %v577, %v58
    %vm600 = vcmp.eq.s32.totalorder %v580, %v58
    %vm601 = vcmp.eq.s32.totalorder %v583, %v58
    %vm602 = vcmp.eq.s32.totalorder %v586, %v58
    %v603 = vsel %vm587, 1.0, 0.0
    %v604 = vsel %vm588, 1.0, 0.0
    %v605 = vsel %vm589, 1.0, 0.0
    %v606 = vsel %vm590, 1.0, 0.0
    %v607 = vsel %vm591, 1.0, 0.0
    %v608 = vsel %vm592, 1.0, 0.0
    %v609 = vsel %vm593, 1.0, 0.0
    %v610 = vsel %vm594, 1.0, 0.0
    %v611 = vsel %vm595, 1.0, 0.0
    %v612 = vsel %vm596, 1.0, 0.0
    %v613 = vsel %vm597, 1.0, 0.0
    %v614 = vsel %vm598, 1.0, 0.0
    %v615 = vsel %vm599, 1.0, 0.0
    %v616 = vsel %vm600, 1.0, 0.0
    %v617 = vsel %vm601, 1.0, 0.0
    %v618 = vsel %vm602, 1.0, 0.0
    %v619 = vadd.f32 %v523, %v603
    %v620 = vadd.f32 %v524, %v604
    %v621 = vadd.f32 %v525, %v605
    %v622 = vadd.f32 %v526, %v606
    %v623 = vadd.f32 %v527, %v607
    %v624 = vadd.f32 %v528, %v608
    %v625 = vadd.f32 %v529, %v609
    %v626 = vadd.f32 %v530, %v610
    %v627 = vadd.f32 %v531, %v611
    %v628 = vadd.f32 %v532, %v612
    %v629 = vadd.f32 %v533, %v613
    %v630 = vadd.f32 %v534, %v614
    %v631 = vadd.f32 %v535, %v615
    %v632 = vadd.f32 %v536, %v616
    %v633 = vadd.f32 %v537, %v617
    %v634 = vadd.f32 %v538, %v618
    %635 = vset.pattern.permute.xlu0 6
    %636 = vperm.xlu0 %635, %v41
    %v637 = vpop.permute.xlu0 %636
    %638 = vset.pattern.permute.xlu0 6
    %639 = vperm.xlu0 %638, %v42
    %v640 = vpop.permute.xlu0 %639
    %641 = vset.pattern.permute.xlu0 6
    %642 = vperm.xlu0 %641, %v43
    %v643 = vpop.permute.xlu0 %642
    %644 = vset.pattern.permute.xlu0 6
    %645 = vperm.xlu0 %644, %v44
    %v646 = vpop.permute.xlu0 %645
    %647 = vset.pattern.permute.xlu0 6
    %648 = vperm.xlu0 %647, %v45
    %v649 = vpop.permute.xlu0 %648
    %650 = vset.pattern.permute.xlu0 6
    %651 = vperm.xlu0 %650, %v46
    %v652 = vpop.permute.xlu0 %651
    %653 = vset.pattern.permute.xlu0 6
    %654 = vperm.xlu0 %653, %v47
    %v655 = vpop.permute.xlu0 %654
    %656 = vset.pattern.permute.xlu0 6
    %657 = vperm.xlu0 %656, %v48
    %v658 = vpop.permute.xlu0 %657
    %659 = vset.pattern.permute.xlu0 6
    %660 = vperm.xlu0 %659, %v49
    %v661 = vpop.permute.xlu0 %660
    %662 = vset.pattern.permute.xlu0 6
    %663 = vperm.xlu0 %662, %v50
    %v664 = vpop.permute.xlu0 %663
    %665 = vset.pattern.permute.xlu0 6
    %666 = vperm.xlu0 %665, %v51
    %v667 = vpop.permute.xlu0 %666
    %668 = vset.pattern.permute.xlu0 6
    %669 = vperm.xlu0 %668, %v52
    %v670 = vpop.permute.xlu0 %669
    %671 = vset.pattern.permute.xlu0 6
    %672 = vperm.xlu0 %671, %v53
    %v673 = vpop.permute.xlu0 %672
    %674 = vset.pattern.permute.xlu0 6
    %675 = vperm.xlu0 %674, %v54
    %v676 = vpop.permute.xlu0 %675
    %677 = vset.pattern.permute.xlu0 6
    %678 = vperm.xlu0 %677, %v55
    %v679 = vpop.permute.xlu0 %678
    %680 = vset.pattern.permute.xlu0 6
    %681 = vperm.xlu0 %680, %v56
    %v682 = vpop.permute.xlu0 %681
    %vm683 = vcmp.eq.s32.totalorder %v637, %v58
    %vm684 = vcmp.eq.s32.totalorder %v640, %v58
    %vm685 = vcmp.eq.s32.totalorder %v643, %v58
    %vm686 = vcmp.eq.s32.totalorder %v646, %v58
    %vm687 = vcmp.eq.s32.totalorder %v649, %v58
    %vm688 = vcmp.eq.s32.totalorder %v652, %v58
    %vm689 = vcmp.eq.s32.totalorder %v655, %v58
    %vm690 = vcmp.eq.s32.totalorder %v658, %v58
    %vm691 = vcmp.eq.s32.totalorder %v661, %v58
    %vm692 = vcmp.eq.s32.totalorder %v664, %v58
    %vm693 = vcmp.eq.s32.totalorder %v667, %v58
    %vm694 = vcmp.eq.s32.totalorder %v670, %v58
    %vm695 = vcmp.eq.s32.totalorder %v673, %v58
    %vm696 = vcmp.eq.s32.totalorder %v676, %v58
    %vm697 = vcmp.eq.s32.totalorder %v679, %v58
    %vm698 = vcmp.eq.s32.totalorder %v682, %v58
    %v699 = vsel %vm683, 1.0, 0.0
    %v700 = vsel %vm684, 1.0, 0.0
    %v701 = vsel %vm685, 1.0, 0.0
    %v702 = vsel %vm686, 1.0, 0.0
    %v703 = vsel %vm687, 1.0, 0.0
    %v704 = vsel %vm688, 1.0, 0.0
    %v705 = vsel %vm689, 1.0, 0.0
    %v706 = vsel %vm690, 1.0, 0.0
    %v707 = vsel %vm691, 1.0, 0.0
    %v708 = vsel %vm692, 1.0, 0.0
    %v709 = vsel %vm693, 1.0, 0.0
    %v710 = vsel %vm694, 1.0, 0.0
    %v711 = vsel %vm695, 1.0, 0.0
    %v712 = vsel %vm696, 1.0, 0.0
    %v713 = vsel %vm697, 1.0, 0.0
    %v714 = vsel %vm698, 1.0, 0.0
    %v715 = vadd.f32 %v619, %v699
    %v716 = vadd.f32 %v620, %v700
    %v717 = vadd.f32 %v621, %v701
    %v718 = vadd.f32 %v622, %v702
    %v719 = vadd.f32 %v623, %v703
    %v720 = vadd.f32 %v624, %v704
    %v721 = vadd.f32 %v625, %v705
    %v722 = vadd.f32 %v626, %v706
    %v723 = vadd.f32 %v627, %v707
    %v724 = vadd.f32 %v628, %v708
    %v725 = vadd.f32 %v629, %v709
    %v726 = vadd.f32 %v630, %v710
    %v727 = vadd.f32 %v631, %v711
    %v728 = vadd.f32 %v632, %v712
    %v729 = vadd.f32 %v633, %v713
    %v730 = vadd.f32 %v634, %v714
    %731 = vset.pattern.permute.xlu0 7
    %732 = vperm.xlu0 %731, %v41
    %v733 = vpop.permute.xlu0 %732
    %734 = vset.pattern.permute.xlu0 7
    %735 = vperm.xlu0 %734, %v42
    %v736 = vpop.permute.xlu0 %735
    %737 = vset.pattern.permute.xlu0 7
    %738 = vperm.xlu0 %737, %v43
    %v739 = vpop.permute.xlu0 %738
    %740 = vset.pattern.permute.xlu0 7
    %741 = vperm.xlu0 %740, %v44
    %v742 = vpop.permute.xlu0 %741
    %743 = vset.pattern.permute.xlu0 7
    %744 = vperm.xlu0 %743, %v45
    %v745 = vpop.permute.xlu0 %744
    %746 = vset.pattern.permute.xlu0 7
    %747 = vperm.xlu0 %746, %v46
    %v748 = vpop.permute.xlu0 %747
    %749 = vset.pattern.permute.xlu0 7
    %750 = vperm.xlu0 %749, %v47
    %v751 = vpop.permute.xlu0 %750
    %752 = vset.pattern.permute.xlu0 7
    %753 = vperm.xlu0 %752, %v48
    %v754 = vpop.permute.xlu0 %753
    %755 = vset.pattern.permute.xlu0 7
    %756 = vperm.xlu0 %755, %v49
    %v757 = vpop.permute.xlu0 %756
    %758 = vset.pattern.permute.xlu0 7
    %759 = vperm.xlu0 %758, %v50
    %v760 = vpop.permute.xlu0 %759
    %761 = vset.pattern.permute.xlu0 7
    %762 = vperm.xlu0 %761, %v51
    %v763 = vpop.permute.xlu0 %762
    %764 = vset.pattern.permute.xlu0 7
    %765 = vperm.xlu0 %764, %v52
    %v766 = vpop.permute.xlu0 %765
    %767 = vset.pattern.permute.xlu0 7
    %768 = vperm.xlu0 %767, %v53
    %v769 = vpop.permute.xlu0 %768
    %770 = vset.pattern.permute.xlu0 7
    %771 = vperm.xlu0 %770, %v54
    %v772 = vpop.permute.xlu0 %771
    %773 = vset.pattern.permute.xlu0 7
    %774 = vperm.xlu0 %773, %v55
    %v775 = vpop.permute.xlu0 %774
    %776 = vset.pattern.permute.xlu0 7
    %777 = vperm.xlu0 %776, %v56
    %v778 = vpop.permute.xlu0 %777
    %vm779 = vcmp.eq.s32.totalorder %v733, %v58
    %vm780 = vcmp.eq.s32.totalorder %v736, %v58
    %vm781 = vcmp.eq.s32.totalorder %v739, %v58
    %vm782 = vcmp.eq.s32.totalorder %v742, %v58
    %vm783 = vcmp.eq.s32.totalorder %v745, %v58
    %vm784 = vcmp.eq.s32.totalorder %v748, %v58
    %vm785 = vcmp.eq.s32.totalorder %v751, %v58
    %vm786 = vcmp.eq.s32.totalorder %v754, %v58
    %vm787 = vcmp.eq.s32.totalorder %v757, %v58
    %vm788 = vcmp.eq.s32.totalorder %v760, %v58
    %vm789 = vcmp.eq.s32.totalorder %v763, %v58
    %vm790 = vcmp.eq.s32.totalorder %v766, %v58
    %vm791 = vcmp.eq.s32.totalorder %v769, %v58
    %vm792 = vcmp.eq.s32.totalorder %v772, %v58
    %vm793 = vcmp.eq.s32.totalorder %v775, %v58
    %vm794 = vcmp.eq.s32.totalorder %v778, %v58
    %v795 = vsel %vm779, 1.0, 0.0
    %v796 = vsel %vm780, 1.0, 0.0
    %v797 = vsel %vm781, 1.0, 0.0
    %v798 = vsel %vm782, 1.0, 0.0
    %v799 = vsel %vm783, 1.0, 0.0
    %v800 = vsel %vm784, 1.0, 0.0
    %v801 = vsel %vm785, 1.0, 0.0
    %v802 = vsel %vm786, 1.0, 0.0
    %v803 = vsel %vm787, 1.0, 0.0
    %v804 = vsel %vm788, 1.0, 0.0
    %v805 = vsel %vm789, 1.0, 0.0
    %v806 = vsel %vm790, 1.0, 0.0
    %v807 = vsel %vm791, 1.0, 0.0
    %v808 = vsel %vm792, 1.0, 0.0
    %v809 = vsel %vm793, 1.0, 0.0
    %v810 = vsel %vm794, 1.0, 0.0
    %v811 = vadd.f32 %v715, %v795
    %v812 = vadd.f32 %v716, %v796
    %v813 = vadd.f32 %v717, %v797
    %v814 = vadd.f32 %v718, %v798
    %v815 = vadd.f32 %v719, %v799
    %v816 = vadd.f32 %v720, %v800
    %v817 = vadd.f32 %v721, %v801
    %v818 = vadd.f32 %v722, %v802
    %v819 = vadd.f32 %v723, %v803
    %v820 = vadd.f32 %v724, %v804
    %v821 = vadd.f32 %v725, %v805
    %v822 = vadd.f32 %v726, %v806
    %v823 = vadd.f32 %v727, %v807
    %v824 = vadd.f32 %v728, %v808
    %v825 = vadd.f32 %v729, %v809
    %v826 = vadd.f32 %v730, %v810
    %827 = vset.pattern.permute.xlu0 8
    %828 = vperm.xlu0 %827, %v41
    %v829 = vpop.permute.xlu0 %828
    %830 = vset.pattern.permute.xlu0 8
    %831 = vperm.xlu0 %830, %v42
    %v832 = vpop.permute.xlu0 %831
    %833 = vset.pattern.permute.xlu0 8
    %834 = vperm.xlu0 %833, %v43
    %v835 = vpop.permute.xlu0 %834
    %836 = vset.pattern.permute.xlu0 8
    %837 = vperm.xlu0 %836, %v44
    %v838 = vpop.permute.xlu0 %837
    %839 = vset.pattern.permute.xlu0 8
    %840 = vperm.xlu0 %839, %v45
    %v841 = vpop.permute.xlu0 %840
    %842 = vset.pattern.permute.xlu0 8
    %843 = vperm.xlu0 %842, %v46
    %v844 = vpop.permute.xlu0 %843
    %845 = vset.pattern.permute.xlu0 8
    %846 = vperm.xlu0 %845, %v47
    %v847 = vpop.permute.xlu0 %846
    %848 = vset.pattern.permute.xlu0 8
    %849 = vperm.xlu0 %848, %v48
    %v850 = vpop.permute.xlu0 %849
    %851 = vset.pattern.permute.xlu0 8
    %852 = vperm.xlu0 %851, %v49
    %v853 = vpop.permute.xlu0 %852
    %854 = vset.pattern.permute.xlu0 8
    %855 = vperm.xlu0 %854, %v50
    %v856 = vpop.permute.xlu0 %855
    %857 = vset.pattern.permute.xlu0 8
    %858 = vperm.xlu0 %857, %v51
    %v859 = vpop.permute.xlu0 %858
    %860 = vset.pattern.permute.xlu0 8
    %861 = vperm.xlu0 %860, %v52
    %v862 = vpop.permute.xlu0 %861
    %863 = vset.pattern.permute.xlu0 8
    %864 = vperm.xlu0 %863, %v53
    %v865 = vpop.permute.xlu0 %864
    %866 = vset.pattern.permute.xlu0 8
    %867 = vperm.xlu0 %866, %v54
    %v868 = vpop.permute.xlu0 %867
    %869 = vset.pattern.permute.xlu0 8
    %870 = vperm.xlu0 %869, %v55
    %v871 = vpop.permute.xlu0 %870
    %872 = vset.pattern.permute.xlu0 8
    %873 = vperm.xlu0 %872, %v56
    %v874 = vpop.permute.xlu0 %873
    %vm875 = vcmp.eq.s32.totalorder %v829, %v58
    %vm876 = vcmp.eq.s32.totalorder %v832, %v58
    %vm877 = vcmp.eq.s32.totalorder %v835, %v58
    %vm878 = vcmp.eq.s32.totalorder %v838, %v58
    %vm879 = vcmp.eq.s32.totalorder %v841, %v58
    %vm880 = vcmp.eq.s32.totalorder %v844, %v58
    %vm881 = vcmp.eq.s32.totalorder %v847, %v58
    %vm882 = vcmp.eq.s32.totalorder %v850, %v58
    %vm883 = vcmp.eq.s32.totalorder %v853, %v58
    %vm884 = vcmp.eq.s32.totalorder %v856, %v58
    %vm885 = vcmp.eq.s32.totalorder %v859, %v58
    %vm886 = vcmp.eq.s32.totalorder %v862, %v58
    %vm887 = vcmp.eq.s32.totalorder %v865, %v58
    %vm888 = vcmp.eq.s32.totalorder %v868, %v58
    %vm889 = vcmp.eq.s32.totalorder %v871, %v58
    %vm890 = vcmp.eq.s32.totalorder %v874, %v58
    %v891 = vsel %vm875, 1.0, 0.0
    %v892 = vsel %vm876, 1.0, 0.0
    %v893 = vsel %vm877, 1.0, 0.0
    %v894 = vsel %vm878, 1.0, 0.0
    %v895 = vsel %vm879, 1.0, 0.0
    %v896 = vsel %vm880, 1.0, 0.0
    %v897 = vsel %vm881, 1.0, 0.0
    %v898 = vsel %vm882, 1.0, 0.0
    %v899 = vsel %vm883, 1.0, 0.0
    %v900 = vsel %vm884, 1.0, 0.0
    %v901 = vsel %vm885, 1.0, 0.0
    %v902 = vsel %vm886, 1.0, 0.0
    %v903 = vsel %vm887, 1.0, 0.0
    %v904 = vsel %vm888, 1.0, 0.0
    %v905 = vsel %vm889, 1.0, 0.0
    %v906 = vsel %vm890, 1.0, 0.0
    %v907 = vadd.f32 %v811, %v891
    %v908 = vadd.f32 %v812, %v892
    %v909 = vadd.f32 %v813, %v893
    %v910 = vadd.f32 %v814, %v894
    %v911 = vadd.f32 %v815, %v895
    %v912 = vadd.f32 %v816, %v896
    %v913 = vadd.f32 %v817, %v897
    %v914 = vadd.f32 %v818, %v898
    %v915 = vadd.f32 %v819, %v899
    %v916 = vadd.f32 %v820, %v900
    %v917 = vadd.f32 %v821, %v901
    %v918 = vadd.f32 %v822, %v902
    %v919 = vadd.f32 %v823, %v903
    %v920 = vadd.f32 %v824, %v904
    %v921 = vadd.f32 %v825, %v905
    %v922 = vadd.f32 %v826, %v906
    %923 = vset.pattern.permute.xlu0 9
    %924 = vperm.xlu0 %923, %v41
    %v925 = vpop.permute.xlu0 %924
    %926 = vset.pattern.permute.xlu0 9
    %927 = vperm.xlu0 %926, %v42
    %v928 = vpop.permute.xlu0 %927
    %929 = vset.pattern.permute.xlu0 9
    %930 = vperm.xlu0 %929, %v43
    %v931 = vpop.permute.xlu0 %930
    %932 = vset.pattern.permute.xlu0 9
    %933 = vperm.xlu0 %932, %v44
    %v934 = vpop.permute.xlu0 %933
    %935 = vset.pattern.permute.xlu0 9
    %936 = vperm.xlu0 %935, %v45
    %v937 = vpop.permute.xlu0 %936
    %938 = vset.pattern.permute.xlu0 9
    %939 = vperm.xlu0 %938, %v46
    %v940 = vpop.permute.xlu0 %939
    %941 = vset.pattern.permute.xlu0 9
    %942 = vperm.xlu0 %941, %v47
    %v943 = vpop.permute.xlu0 %942
    %944 = vset.pattern.permute.xlu0 9
    %945 = vperm.xlu0 %944, %v48
    %v946 = vpop.permute.xlu0 %945
    %947 = vset.pattern.permute.xlu0 9
    %948 = vperm.xlu0 %947, %v49
    %v949 = vpop.permute.xlu0 %948
    %950 = vset.pattern.permute.xlu0 9
    %951 = vperm.xlu0 %950, %v50
    %v952 = vpop.permute.xlu0 %951
    %953 = vset.pattern.permute.xlu0 9
    %954 = vperm.xlu0 %953, %v51
    %v955 = vpop.permute.xlu0 %954
    %956 = vset.pattern.permute.xlu0 9
    %957 = vperm.xlu0 %956, %v52
    %v958 = vpop.permute.xlu0 %957
    %959 = vset.pattern.permute.xlu0 9
    %960 = vperm.xlu0 %959, %v53
    %v961 = vpop.permute.xlu0 %960
    %962 = vset.pattern.permute.xlu0 9
    %963 = vperm.xlu0 %962, %v54
    %v964 = vpop.permute.xlu0 %963
    %965 = vset.pattern.permute.xlu0 9
    %966 = vperm.xlu0 %965, %v55
    %v967 = vpop.permute.xlu0 %966
    %968 = vset.pattern.permute.xlu0 9
    %969 = vperm.xlu0 %968, %v56
    %v970 = vpop.permute.xlu0 %969
    %vm971 = vcmp.eq.s32.totalorder %v925, %v58
    %vm972 = vcmp.eq.s32.totalorder %v928, %v58
    %vm973 = vcmp.eq.s32.totalorder %v931, %v58
    %vm974 = vcmp.eq.s32.totalorder %v934, %v58
    %vm975 = vcmp.eq.s32.totalorder %v937, %v58
    %vm976 = vcmp.eq.s32.totalorder %v940, %v58
    %vm977 = vcmp.eq.s32.totalorder %v943, %v58
    %vm978 = vcmp.eq.s32.totalorder %v946, %v58
    %vm979 = vcmp.eq.s32.totalorder %v949, %v58
    %vm980 = vcmp.eq.s32.totalorder %v952, %v58
    %vm981 = vcmp.eq.s32.totalorder %v955, %v58
    %vm982 = vcmp.eq.s32.totalorder %v958, %v58
    %vm983 = vcmp.eq.s32.totalorder %v961, %v58
    %vm984 = vcmp.eq.s32.totalorder %v964, %v58
    %vm985 = vcmp.eq.s32.totalorder %v967, %v58
    %vm986 = vcmp.eq.s32.totalorder %v970, %v58
    %v987 = vsel %vm971, 1.0, 0.0
    %v988 = vsel %vm972, 1.0, 0.0
    %v989 = vsel %vm973, 1.0, 0.0
    %v990 = vsel %vm974, 1.0, 0.0
    %v991 = vsel %vm975, 1.0, 0.0
    %v992 = vsel %vm976, 1.0, 0.0
    %v993 = vsel %vm977, 1.0, 0.0
    %v994 = vsel %vm978, 1.0, 0.0
    %v995 = vsel %vm979, 1.0, 0.0
    %v996 = vsel %vm980, 1.0, 0.0
    %v997 = vsel %vm981, 1.0, 0.0
    %v998 = vsel %vm982, 1.0, 0.0
    %v999 = vsel %vm983, 1.0, 0.0
    %v1000 = vsel %vm984, 1.0, 0.0
    %v1001 = vsel %vm985, 1.0, 0.0
    %v1002 = vsel %vm986, 1.0, 0.0
    %v1003 = vadd.f32 %v907, %v987
    %v1004 = vadd.f32 %v908, %v988
    %v1005 = vadd.f32 %v909, %v989
    %v1006 = vadd.f32 %v910, %v990
    %v1007 = vadd.f32 %v911, %v991
    %v1008 = vadd.f32 %v912, %v992
    %v1009 = vadd.f32 %v913, %v993
    %v1010 = vadd.f32 %v914, %v994
    %v1011 = vadd.f32 %v915, %v995
    %v1012 = vadd.f32 %v916, %v996
    %v1013 = vadd.f32 %v917, %v997
    %v1014 = vadd.f32 %v918, %v998
    %v1015 = vadd.f32 %v919, %v999
    %v1016 = vadd.f32 %v920, %v1000
    %v1017 = vadd.f32 %v921, %v1001
    %v1018 = vadd.f32 %v922, %v1002
    %1019 = vset.pattern.permute.xlu0 10
    %1020 = vperm.xlu0 %1019, %v41
    %v1021 = vpop.permute.xlu0 %1020
    %1022 = vset.pattern.permute.xlu0 10
    %1023 = vperm.xlu0 %1022, %v42
    %v1024 = vpop.permute.xlu0 %1023
    %1025 = vset.pattern.permute.xlu0 10
    %1026 = vperm.xlu0 %1025, %v43
    %v1027 = vpop.permute.xlu0 %1026
    %1028 = vset.pattern.permute.xlu0 10
    %1029 = vperm.xlu0 %1028, %v44
    %v1030 = vpop.permute.xlu0 %1029
    %1031 = vset.pattern.permute.xlu0 10
    %1032 = vperm.xlu0 %1031, %v45
    %v1033 = vpop.permute.xlu0 %1032
    %1034 = vset.pattern.permute.xlu0 10
    %1035 = vperm.xlu0 %1034, %v46
    %v1036 = vpop.permute.xlu0 %1035
    %1037 = vset.pattern.permute.xlu0 10
    %1038 = vperm.xlu0 %1037, %v47
    %v1039 = vpop.permute.xlu0 %1038
    %1040 = vset.pattern.permute.xlu0 10
    %1041 = vperm.xlu0 %1040, %v48
    %v1042 = vpop.permute.xlu0 %1041
    %1043 = vset.pattern.permute.xlu0 10
    %1044 = vperm.xlu0 %1043, %v49
    %v1045 = vpop.permute.xlu0 %1044
    %1046 = vset.pattern.permute.xlu0 10
    %1047 = vperm.xlu0 %1046, %v50
    %v1048 = vpop.permute.xlu0 %1047
    %1049 = vset.pattern.permute.xlu0 10
    %1050 = vperm.xlu0 %1049, %v51
    %v1051 = vpop.permute.xlu0 %1050
    %1052 = vset.pattern.permute.xlu0 10
    %1053 = vperm.xlu0 %1052, %v52
    %v1054 = vpop.permute.xlu0 %1053
    %1055 = vset.pattern.permute.xlu0 10
    %1056 = vperm.xlu0 %1055, %v53
    %v1057 = vpop.permute.xlu0 %1056
    %1058 = vset.pattern.permute.xlu0 10
    %1059 = vperm.xlu0 %1058, %v54
    %v1060 = vpop.permute.xlu0 %1059
    %1061 = vset.pattern.permute.xlu0 10
    %1062 = vperm.xlu0 %1061, %v55
    %v1063 = vpop.permute.xlu0 %1062
    %1064 = vset.pattern.permute.xlu0 10
    %1065 = vperm.xlu0 %1064, %v56
    %v1066 = vpop.permute.xlu0 %1065
    %vm1067 = vcmp.eq.s32.totalorder %v1021, %v58
    %vm1068 = vcmp.eq.s32.totalorder %v1024, %v58
    %vm1069 = vcmp.eq.s32.totalorder %v1027, %v58
    %vm1070 = vcmp.eq.s32.totalorder %v1030, %v58
    %vm1071 = vcmp.eq.s32.totalorder %v1033, %v58
    %vm1072 = vcmp.eq.s32.totalorder %v1036, %v58
    %vm1073 = vcmp.eq.s32.totalorder %v1039, %v58
    %vm1074 = vcmp.eq.s32.totalorder %v1042, %v58
    %vm1075 = vcmp.eq.s32.totalorder %v1045, %v58
    %vm1076 = vcmp.eq.s32.totalorder %v1048, %v58
    %vm1077 = vcmp.eq.s32.totalorder %v1051, %v58
    %vm1078 = vcmp.eq.s32.totalorder %v1054, %v58
    %vm1079 = vcmp.eq.s32.totalorder %v1057, %v58
    %vm1080 = vcmp.eq.s32.totalorder %v1060, %v58
    %vm1081 = vcmp.eq.s32.totalorder %v1063, %v58
    %vm1082 = vcmp.eq.s32.totalorder %v1066, %v58
    %v1083 = vsel %vm1067, 1.0, 0.0
    %v1084 = vsel %vm1068, 1.0, 0.0
    %v1085 = vsel %vm1069, 1.0, 0.0
    %v1086 = vsel %vm1070, 1.0, 0.0
    %v1087 = vsel %vm1071, 1.0, 0.0
    %v1088 = vsel %vm1072, 1.0, 0.0
    %v1089 = vsel %vm1073, 1.0, 0.0
    %v1090 = vsel %vm1074, 1.0, 0.0
    %v1091 = vsel %vm1075, 1.0, 0.0
    %v1092 = vsel %vm1076, 1.0, 0.0
    %v1093 = vsel %vm1077, 1.0, 0.0
    %v1094 = vsel %vm1078, 1.0, 0.0
    %v1095 = vsel %vm1079, 1.0, 0.0
    %v1096 = vsel %vm1080, 1.0, 0.0
    %v1097 = vsel %vm1081, 1.0, 0.0
    %v1098 = vsel %vm1082, 1.0, 0.0
    %v1099 = vadd.f32 %v1003, %v1083
    %v1100 = vadd.f32 %v1004, %v1084
    %v1101 = vadd.f32 %v1005, %v1085
    %v1102 = vadd.f32 %v1006, %v1086
    %v1103 = vadd.f32 %v1007, %v1087
    %v1104 = vadd.f32 %v1008, %v1088
    %v1105 = vadd.f32 %v1009, %v1089
    %v1106 = vadd.f32 %v1010, %v1090
    %v1107 = vadd.f32 %v1011, %v1091
    %v1108 = vadd.f32 %v1012, %v1092
    %v1109 = vadd.f32 %v1013, %v1093
    %v1110 = vadd.f32 %v1014, %v1094
    %v1111 = vadd.f32 %v1015, %v1095
    %v1112 = vadd.f32 %v1016, %v1096
    %v1113 = vadd.f32 %v1017, %v1097
    %v1114 = vadd.f32 %v1018, %v1098
    %1115 = vset.pattern.permute.xlu0 11
    %1116 = vperm.xlu0 %1115, %v41
    %v1117 = vpop.permute.xlu0 %1116
    %1118 = vset.pattern.permute.xlu0 11
    %1119 = vperm.xlu0 %1118, %v42
    %v1120 = vpop.permute.xlu0 %1119
    %1121 = vset.pattern.permute.xlu0 11
    %1122 = vperm.xlu0 %1121, %v43
    %v1123 = vpop.permute.xlu0 %1122
    %1124 = vset.pattern.permute.xlu0 11
    %1125 = vperm.xlu0 %1124, %v44
    %v1126 = vpop.permute.xlu0 %1125
    %1127 = vset.pattern.permute.xlu0 11
    %1128 = vperm.xlu0 %1127, %v45
    %v1129 = vpop.permute.xlu0 %1128
    %1130 = vset.pattern.permute.xlu0 11
    %1131 = vperm.xlu0 %1130, %v46
    %v1132 = vpop.permute.xlu0 %1131
    %1133 = vset.pattern.permute.xlu0 11
    %1134 = vperm.xlu0 %1133, %v47
    %v1135 = vpop.permute.xlu0 %1134
    %1136 = vset.pattern.permute.xlu0 11
    %1137 = vperm.xlu0 %1136, %v48
    %v1138 = vpop.permute.xlu0 %1137
    %1139 = vset.pattern.permute.xlu0 11
    %1140 = vperm.xlu0 %1139, %v49
    %v1141 = vpop.permute.xlu0 %1140
    %1142 = vset.pattern.permute.xlu0 11
    %1143 = vperm.xlu0 %1142, %v50
    %v1144 = vpop.permute.xlu0 %1143
    %1145 = vset.pattern.permute.xlu0 11
    %1146 = vperm.xlu0 %1145, %v51
    %v1147 = vpop.permute.xlu0 %1146
    %1148 = vset.pattern.permute.xlu0 11
    %1149 = vperm.xlu0 %1148, %v52
    %v1150 = vpop.permute.xlu0 %1149
    %1151 = vset.pattern.permute.xlu0 11
    %1152 = vperm.xlu0 %1151, %v53
    %v1153 = vpop.permute.xlu0 %1152
    %1154 = vset.pattern.permute.xlu0 11
    %1155 = vperm.xlu0 %1154, %v54
    %v1156 = vpop.permute.xlu0 %1155
    %1157 = vset.pattern.permute.xlu0 11
    %1158 = vperm.xlu0 %1157, %v55
    %v1159 = vpop.permute.xlu0 %1158
    %1160 = vset.pattern.permute.xlu0 11
    %1161 = vperm.xlu0 %1160, %v56
    %v1162 = vpop.permute.xlu0 %1161
    %vm1163 = vcmp.eq.s32.totalorder %v1117, %v58
    %vm1164 = vcmp.eq.s32.totalorder %v1120, %v58
    %vm1165 = vcmp.eq.s32.totalorder %v1123, %v58
    %vm1166 = vcmp.eq.s32.totalorder %v1126, %v58
    %vm1167 = vcmp.eq.s32.totalorder %v1129, %v58
    %vm1168 = vcmp.eq.s32.totalorder %v1132, %v58
    %vm1169 = vcmp.eq.s32.totalorder %v1135, %v58
    %vm1170 = vcmp.eq.s32.totalorder %v1138, %v58
    %vm1171 = vcmp.eq.s32.totalorder %v1141, %v58
    %vm1172 = vcmp.eq.s32.totalorder %v1144, %v58
    %vm1173 = vcmp.eq.s32.totalorder %v1147, %v58
    %vm1174 = vcmp.eq.s32.totalorder %v1150, %v58
    %vm1175 = vcmp.eq.s32.totalorder %v1153, %v58
    %vm1176 = vcmp.eq.s32.totalorder %v1156, %v58
    %vm1177 = vcmp.eq.s32.totalorder %v1159, %v58
    %vm1178 = vcmp.eq.s32.totalorder %v1162, %v58
    %v1179 = vsel %vm1163, 1.0, 0.0
    %v1180 = vsel %vm1164, 1.0, 0.0
    %v1181 = vsel %vm1165, 1.0, 0.0
    %v1182 = vsel %vm1166, 1.0, 0.0
    %v1183 = vsel %vm1167, 1.0, 0.0
    %v1184 = vsel %vm1168, 1.0, 0.0
    %v1185 = vsel %vm1169, 1.0, 0.0
    %v1186 = vsel %vm1170, 1.0, 0.0
    %v1187 = vsel %vm1171, 1.0, 0.0
    %v1188 = vsel %vm1172, 1.0, 0.0
    %v1189 = vsel %vm1173, 1.0, 0.0
    %v1190 = vsel %vm1174, 1.0, 0.0
    %v1191 = vsel %vm1175, 1.0, 0.0
    %v1192 = vsel %vm1176, 1.0, 0.0
    %v1193 = vsel %vm1177, 1.0, 0.0
    %v1194 = vsel %vm1178, 1.0, 0.0
    %v1195 = vadd.f32 %v1099, %v1179
    %v1196 = vadd.f32 %v1100, %v1180
    %v1197 = vadd.f32 %v1101, %v1181
    %v1198 = vadd.f32 %v1102, %v1182
    %v1199 = vadd.f32 %v1103, %v1183
    %v1200 = vadd.f32 %v1104, %v1184
    %v1201 = vadd.f32 %v1105, %v1185
    %v1202 = vadd.f32 %v1106, %v1186
    %v1203 = vadd.f32 %v1107, %v1187
    %v1204 = vadd.f32 %v1108, %v1188
    %v1205 = vadd.f32 %v1109, %v1189
    %v1206 = vadd.f32 %v1110, %v1190
    %v1207 = vadd.f32 %v1111, %v1191
    %v1208 = vadd.f32 %v1112, %v1192
    %v1209 = vadd.f32 %v1113, %v1193
    %v1210 = vadd.f32 %v1114, %v1194
    %1211 = vset.pattern.permute.xlu0 12
    %1212 = vperm.xlu0 %1211, %v41
    %v1213 = vpop.permute.xlu0 %1212
    %1214 = vset.pattern.permute.xlu0 12
    %1215 = vperm.xlu0 %1214, %v42
    %v1216 = vpop.permute.xlu0 %1215
    %1217 = vset.pattern.permute.xlu0 12
    %1218 = vperm.xlu0 %1217, %v43
    %v1219 = vpop.permute.xlu0 %1218
    %1220 = vset.pattern.permute.xlu0 12
    %1221 = vperm.xlu0 %1220, %v44
    %v1222 = vpop.permute.xlu0 %1221
    %1223 = vset.pattern.permute.xlu0 12
    %1224 = vperm.xlu0 %1223, %v45
    %v1225 = vpop.permute.xlu0 %1224
    %1226 = vset.pattern.permute.xlu0 12
    %1227 = vperm.xlu0 %1226, %v46
    %v1228 = vpop.permute.xlu0 %1227
    %1229 = vset.pattern.permute.xlu0 12
    %1230 = vperm.xlu0 %1229, %v47
    %v1231 = vpop.permute.xlu0 %1230
    %1232 = vset.pattern.permute.xlu0 12
    %1233 = vperm.xlu0 %1232, %v48
    %v1234 = vpop.permute.xlu0 %1233
    %1235 = vset.pattern.permute.xlu0 12
    %1236 = vperm.xlu0 %1235, %v49
    %v1237 = vpop.permute.xlu0 %1236
    %1238 = vset.pattern.permute.xlu0 12
    %1239 = vperm.xlu0 %1238, %v50
    %v1240 = vpop.permute.xlu0 %1239
    %1241 = vset.pattern.permute.xlu0 12
    %1242 = vperm.xlu0 %1241, %v51
    %v1243 = vpop.permute.xlu0 %1242
    %1244 = vset.pattern.permute.xlu0 12
    %1245 = vperm.xlu0 %1244, %v52
    %v1246 = vpop.permute.xlu0 %1245
    %1247 = vset.pattern.permute.xlu0 12
    %1248 = vperm.xlu0 %1247, %v53
    %v1249 = vpop.permute.xlu0 %1248
    %1250 = vset.pattern.permute.xlu0 12
    %1251 = vperm.xlu0 %1250, %v54
    %v1252 = vpop.permute.xlu0 %1251
    %1253 = vset.pattern.permute.xlu0 12
    %1254 = vperm.xlu0 %1253, %v55
    %v1255 = vpop.permute.xlu0 %1254
    %1256 = vset.pattern.permute.xlu0 12
    %1257 = vperm.xlu0 %1256, %v56
    %v1258 = vpop.permute.xlu0 %1257
    %vm1259 = vcmp.eq.s32.totalorder %v1213, %v58
    %vm1260 = vcmp.eq.s32.totalorder %v1216, %v58
    %vm1261 = vcmp.eq.s32.totalorder %v1219, %v58
    %vm1262 = vcmp.eq.s32.totalorder %v1222, %v58
    %vm1263 = vcmp.eq.s32.totalorder %v1225, %v58
    %vm1264 = vcmp.eq.s32.totalorder %v1228, %v58
    %vm1265 = vcmp.eq.s32.totalorder %v1231, %v58
    %vm1266 = vcmp.eq.s32.totalorder %v1234, %v58
    %vm1267 = vcmp.eq.s32.totalorder %v1237, %v58
    %vm1268 = vcmp.eq.s32.totalorder %v1240, %v58
    %vm1269 = vcmp.eq.s32.totalorder %v1243, %v58
    %vm1270 = vcmp.eq.s32.totalorder %v1246, %v58
    %vm1271 = vcmp.eq.s32.totalorder %v1249, %v58
    %vm1272 = vcmp.eq.s32.totalorder %v1252, %v58
    %vm1273 = vcmp.eq.s32.totalorder %v1255, %v58
    %vm1274 = vcmp.eq.s32.totalorder %v1258, %v58
    %v1275 = vsel %vm1259, 1.0, 0.0
    %v1276 = vsel %vm1260, 1.0, 0.0
    %v1277 = vsel %vm1261, 1.0, 0.0
    %v1278 = vsel %vm1262, 1.0, 0.0
    %v1279 = vsel %vm1263, 1.0, 0.0
    %v1280 = vsel %vm1264, 1.0, 0.0
    %v1281 = vsel %vm1265, 1.0, 0.0
    %v1282 = vsel %vm1266, 1.0, 0.0
    %v1283 = vsel %vm1267, 1.0, 0.0
    %v1284 = vsel %vm1268, 1.0, 0.0
    %v1285 = vsel %vm1269, 1.0, 0.0
    %v1286 = vsel %vm1270, 1.0, 0.0
    %v1287 = vsel %vm1271, 1.0, 0.0
    %v1288 = vsel %vm1272, 1.0, 0.0
    %v1289 = vsel %vm1273, 1.0, 0.0
    %v1290 = vsel %vm1274, 1.0, 0.0
    %v1291 = vadd.f32 %v1195, %v1275
    %v1292 = vadd.f32 %v1196, %v1276
    %v1293 = vadd.f32 %v1197, %v1277
    %v1294 = vadd.f32 %v1198, %v1278
    %v1295 = vadd.f32 %v1199, %v1279
    %v1296 = vadd.f32 %v1200, %v1280
    %v1297 = vadd.f32 %v1201, %v1281
    %v1298 = vadd.f32 %v1202, %v1282
    %v1299 = vadd.f32 %v1203, %v1283
    %v1300 = vadd.f32 %v1204, %v1284
    %v1301 = vadd.f32 %v1205, %v1285
    %v1302 = vadd.f32 %v1206, %v1286
    %v1303 = vadd.f32 %v1207, %v1287
    %v1304 = vadd.f32 %v1208, %v1288
    %v1305 = vadd.f32 %v1209, %v1289
    %v1306 = vadd.f32 %v1210, %v1290
    %1307 = vset.pattern.permute.xlu0 13
    %1308 = vperm.xlu0 %1307, %v41
    %v1309 = vpop.permute.xlu0 %1308
    %1310 = vset.pattern.permute.xlu0 13
    %1311 = vperm.xlu0 %1310, %v42
    %v1312 = vpop.permute.xlu0 %1311
    %1313 = vset.pattern.permute.xlu0 13
    %1314 = vperm.xlu0 %1313, %v43
    %v1315 = vpop.permute.xlu0 %1314
    %1316 = vset.pattern.permute.xlu0 13
    %1317 = vperm.xlu0 %1316, %v44
    %v1318 = vpop.permute.xlu0 %1317
    %1319 = vset.pattern.permute.xlu0 13
    %1320 = vperm.xlu0 %1319, %v45
    %v1321 = vpop.permute.xlu0 %1320
    %1322 = vset.pattern.permute.xlu0 13
    %1323 = vperm.xlu0 %1322, %v46
    %v1324 = vpop.permute.xlu0 %1323
    %1325 = vset.pattern.permute.xlu0 13
    %1326 = vperm.xlu0 %1325, %v47
    %v1327 = vpop.permute.xlu0 %1326
    %1328 = vset.pattern.permute.xlu0 13
    %1329 = vperm.xlu0 %1328, %v48
    %v1330 = vpop.permute.xlu0 %1329
    %1331 = vset.pattern.permute.xlu0 13
    %1332 = vperm.xlu0 %1331, %v49
    %v1333 = vpop.permute.xlu0 %1332
    %1334 = vset.pattern.permute.xlu0 13
    %1335 = vperm.xlu0 %1334, %v50
    %v1336 = vpop.permute.xlu0 %1335
    %1337 = vset.pattern.permute.xlu0 13
    %1338 = vperm.xlu0 %1337, %v51
    %v1339 = vpop.permute.xlu0 %1338
    %1340 = vset.pattern.permute.xlu0 13
    %1341 = vperm.xlu0 %1340, %v52
    %v1342 = vpop.permute.xlu0 %1341
    %1343 = vset.pattern.permute.xlu0 13
    %1344 = vperm.xlu0 %1343, %v53
    %v1345 = vpop.permute.xlu0 %1344
    %1346 = vset.pattern.permute.xlu0 13
    %1347 = vperm.xlu0 %1346, %v54
    %v1348 = vpop.permute.xlu0 %1347
    %1349 = vset.pattern.permute.xlu0 13
    %1350 = vperm.xlu0 %1349, %v55
    %v1351 = vpop.permute.xlu0 %1350
    %1352 = vset.pattern.permute.xlu0 13
    %1353 = vperm.xlu0 %1352, %v56
    %v1354 = vpop.permute.xlu0 %1353
    %vm1355 = vcmp.eq.s32.totalorder %v1309, %v58
    %vm1356 = vcmp.eq.s32.totalorder %v1312, %v58
    %vm1357 = vcmp.eq.s32.totalorder %v1315, %v58
    %vm1358 = vcmp.eq.s32.totalorder %v1318, %v58
    %vm1359 = vcmp.eq.s32.totalorder %v1321, %v58
    %vm1360 = vcmp.eq.s32.totalorder %v1324, %v58
    %vm1361 = vcmp.eq.s32.totalorder %v1327, %v58
    %vm1362 = vcmp.eq.s32.totalorder %v1330, %v58
    %vm1363 = vcmp.eq.s32.totalorder %v1333, %v58
    %vm1364 = vcmp.eq.s32.totalorder %v1336, %v58
    %vm1365 = vcmp.eq.s32.totalorder %v1339, %v58
    %vm1366 = vcmp.eq.s32.totalorder %v1342, %v58
    %vm1367 = vcmp.eq.s32.totalorder %v1345, %v58
    %vm1368 = vcmp.eq.s32.totalorder %v1348, %v58
    %vm1369 = vcmp.eq.s32.totalorder %v1351, %v58
    %vm1370 = vcmp.eq.s32.totalorder %v1354, %v58
    %v1371 = vsel %vm1355, 1.0, 0.0
    %v1372 = vsel %vm1356, 1.0, 0.0
    %v1373 = vsel %vm1357, 1.0, 0.0
    %v1374 = vsel %vm1358, 1.0, 0.0
    %v1375 = vsel %vm1359, 1.0, 0.0
    %v1376 = vsel %vm1360, 1.0, 0.0
    %v1377 = vsel %vm1361, 1.0, 0.0
    %v1378 = vsel %vm1362, 1.0, 0.0
    %v1379 = vsel %vm1363, 1.0, 0.0
    %v1380 = vsel %vm1364, 1.0, 0.0
    %v1381 = vsel %vm1365, 1.0, 0.0
    %v1382 = vsel %vm1366, 1.0, 0.0
    %v1383 = vsel %vm1367, 1.0, 0.0
    %v1384 = vsel %vm1368, 1.0, 0.0
    %v1385 = vsel %vm1369, 1.0, 0.0
    %v1386 = vsel %vm1370, 1.0, 0.0
    %v1387 = vadd.f32 %v1291, %v1371
    %v1388 = vadd.f32 %v1292, %v1372
    %v1389 = vadd.f32 %v1293, %v1373
    %v1390 = vadd.f32 %v1294, %v1374
    %v1391 = vadd.f32 %v1295, %v1375
    %v1392 = vadd.f32 %v1296, %v1376
    %v1393 = vadd.f32 %v1297, %v1377
    %v1394 = vadd.f32 %v1298, %v1378
    %v1395 = vadd.f32 %v1299, %v1379
    %v1396 = vadd.f32 %v1300, %v1380
    %v1397 = vadd.f32 %v1301, %v1381
    %v1398 = vadd.f32 %v1302, %v1382
    %v1399 = vadd.f32 %v1303, %v1383
    %v1400 = vadd.f32 %v1304, %v1384
    %v1401 = vadd.f32 %v1305, %v1385
    %v1402 = vadd.f32 %v1306, %v1386
    %1403 = vset.pattern.permute.xlu0 14
    %1404 = vperm.xlu0 %1403, %v41
    %v1405 = vpop.permute.xlu0 %1404
    %1406 = vset.pattern.permute.xlu0 14
    %1407 = vperm.xlu0 %1406, %v42
    %v1408 = vpop.permute.xlu0 %1407
    %1409 = vset.pattern.permute.xlu0 14
    %1410 = vperm.xlu0 %1409, %v43
    %v1411 = vpop.permute.xlu0 %1410
    %1412 = vset.pattern.permute.xlu0 14
    %1413 = vperm.xlu0 %1412, %v44
    %v1414 = vpop.permute.xlu0 %1413
    %1415 = vset.pattern.permute.xlu0 14
    %1416 = vperm.xlu0 %1415, %v45
    %v1417 = vpop.permute.xlu0 %1416
    %1418 = vset.pattern.permute.xlu0 14
    %1419 = vperm.xlu0 %1418, %v46
    %v1420 = vpop.permute.xlu0 %1419
    %1421 = vset.pattern.permute.xlu0 14
    %1422 = vperm.xlu0 %1421, %v47
    %v1423 = vpop.permute.xlu0 %1422
    %1424 = vset.pattern.permute.xlu0 14
    %1425 = vperm.xlu0 %1424, %v48
    %v1426 = vpop.permute.xlu0 %1425
    %1427 = vset.pattern.permute.xlu0 14
    %1428 = vperm.xlu0 %1427, %v49
    %v1429 = vpop.permute.xlu0 %1428
    %1430 = vset.pattern.permute.xlu0 14
    %1431 = vperm.xlu0 %1430, %v50
    %v1432 = vpop.permute.xlu0 %1431
    %1433 = vset.pattern.permute.xlu0 14
    %1434 = vperm.xlu0 %1433, %v51
    %v1435 = vpop.permute.xlu0 %1434
    %1436 = vset.pattern.permute.xlu0 14
    %1437 = vperm.xlu0 %1436, %v52
    %v1438 = vpop.permute.xlu0 %1437
    %1439 = vset.pattern.permute.xlu0 14
    %1440 = vperm.xlu0 %1439, %v53
    %v1441 = vpop.permute.xlu0 %1440
    %1442 = vset.pattern.permute.xlu0 14
    %1443 = vperm.xlu0 %1442, %v54
    %v1444 = vpop.permute.xlu0 %1443
    %1445 = vset.pattern.permute.xlu0 14
    %1446 = vperm.xlu0 %1445, %v55
    %v1447 = vpop.permute.xlu0 %1446
    %1448 = vset.pattern.permute.xlu0 14
    %1449 = vperm.xlu0 %1448, %v56
    %v1450 = vpop.permute.xlu0 %1449
    %vm1451 = vcmp.eq.s32.totalorder %v1405, %v58
    %vm1452 = vcmp.eq.s32.totalorder %v1408, %v58
    %vm1453 = vcmp.eq.s32.totalorder %v1411, %v58
    %vm1454 = vcmp.eq.s32.totalorder %v1414, %v58
    %vm1455 = vcmp.eq.s32.totalorder %v1417, %v58
    %vm1456 = vcmp.eq.s32.totalorder %v1420, %v58
    %vm1457 = vcmp.eq.s32.totalorder %v1423, %v58
    %vm1458 = vcmp.eq.s32.totalorder %v1426, %v58
    %vm1459 = vcmp.eq.s32.totalorder %v1429, %v58
    %vm1460 = vcmp.eq.s32.totalorder %v1432, %v58
    %vm1461 = vcmp.eq.s32.totalorder %v1435, %v58
    %vm1462 = vcmp.eq.s32.totalorder %v1438, %v58
    %vm1463 = vcmp.eq.s32.totalorder %v1441, %v58
    %vm1464 = vcmp.eq.s32.totalorder %v1444, %v58
    %vm1465 = vcmp.eq.s32.totalorder %v1447, %v58
    %vm1466 = vcmp.eq.s32.totalorder %v1450, %v58
    %v1467 = vsel %vm1451, 1.0, 0.0
    %v1468 = vsel %vm1452, 1.0, 0.0
    %v1469 = vsel %vm1453, 1.0, 0.0
    %v1470 = vsel %vm1454, 1.0, 0.0
    %v1471 = vsel %vm1455, 1.0, 0.0
    %v1472 = vsel %vm1456, 1.0, 0.0
    %v1473 = vsel %vm1457, 1.0, 0.0
    %v1474 = vsel %vm1458, 1.0, 0.0
    %v1475 = vsel %vm1459, 1.0, 0.0
    %v1476 = vsel %vm1460, 1.0, 0.0
    %v1477 = vsel %vm1461, 1.0, 0.0
    %v1478 = vsel %vm1462, 1.0, 0.0
    %v1479 = vsel %vm1463, 1.0, 0.0
    %v1480 = vsel %vm1464, 1.0, 0.0
    %v1481 = vsel %vm1465, 1.0, 0.0
    %v1482 = vsel %vm1466, 1.0, 0.0
    %v1483 = vadd.f32 %v1387, %v1467
    %v1484 = vadd.f32 %v1388, %v1468
    %v1485 = vadd.f32 %v1389, %v1469
    %v1486 = vadd.f32 %v1390, %v1470
    %v1487 = vadd.f32 %v1391, %v1471
    %v1488 = vadd.f32 %v1392, %v1472
    %v1489 = vadd.f32 %v1393, %v1473
    %v1490 = vadd.f32 %v1394, %v1474
    %v1491 = vadd.f32 %v1395, %v1475
    %v1492 = vadd.f32 %v1396, %v1476
    %v1493 = vadd.f32 %v1397, %v1477
    %v1494 = vadd.f32 %v1398, %v1478
    %v1495 = vadd.f32 %v1399, %v1479
    %v1496 = vadd.f32 %v1400, %v1480
    %v1497 = vadd.f32 %v1401, %v1481
    %v1498 = vadd.f32 %v1402, %v1482
    %1499 = vset.pattern.permute.xlu0 15
    %1500 = vperm.xlu0 %1499, %v41
    %v1501 = vpop.permute.xlu0 %1500
    %1502 = vset.pattern.permute.xlu0 15
    %1503 = vperm.xlu0 %1502, %v42
    %v1504 = vpop.permute.xlu0 %1503
    %1505 = vset.pattern.permute.xlu0 15
    %1506 = vperm.xlu0 %1505, %v43
    %v1507 = vpop.permute.xlu0 %1506
    %1508 = vset.pattern.permute.xlu0 15
    %1509 = vperm.xlu0 %1508, %v44
    %v1510 = vpop.permute.xlu0 %1509
    %1511 = vset.pattern.permute.xlu0 15
    %1512 = vperm.xlu0 %1511, %v45
    %v1513 = vpop.permute.xlu0 %1512
    %1514 = vset.pattern.permute.xlu0 15
    %1515 = vperm.xlu0 %1514, %v46
    %v1516 = vpop.permute.xlu0 %1515
    %1517 = vset.pattern.permute.xlu0 15
    %1518 = vperm.xlu0 %1517, %v47
    %v1519 = vpop.permute.xlu0 %1518
    %1520 = vset.pattern.permute.xlu0 15
    %1521 = vperm.xlu0 %1520, %v48
    %v1522 = vpop.permute.xlu0 %1521
    %1523 = vset.pattern.permute.xlu0 15
    %1524 = vperm.xlu0 %1523, %v49
    %v1525 = vpop.permute.xlu0 %1524
    %1526 = vset.pattern.permute.xlu0 15
    %1527 = vperm.xlu0 %1526, %v50
    %v1528 = vpop.permute.xlu0 %1527
    %1529 = vset.pattern.permute.xlu0 15
    %1530 = vperm.xlu0 %1529, %v51
    %v1531 = vpop.permute.xlu0 %1530
    %1532 = vset.pattern.permute.xlu0 15
    %1533 = vperm.xlu0 %1532, %v52
    %v1534 = vpop.permute.xlu0 %1533
    %1535 = vset.pattern.permute.xlu0 15
    %1536 = vperm.xlu0 %1535, %v53
    %v1537 = vpop.permute.xlu0 %1536
    %1538 = vset.pattern.permute.xlu0 15
    %1539 = vperm.xlu0 %1538, %v54
    %v1540 = vpop.permute.xlu0 %1539
    %1541 = vset.pattern.permute.xlu0 15
    %1542 = vperm.xlu0 %1541, %v55
    %v1543 = vpop.permute.xlu0 %1542
    %1544 = vset.pattern.permute.xlu0 15
    %1545 = vperm.xlu0 %1544, %v56
    %v1546 = vpop.permute.xlu0 %1545
    %vm1547 = vcmp.eq.s32.totalorder %v1501, %v58
    %vm1548 = vcmp.eq.s32.totalorder %v1504, %v58
    %vm1549 = vcmp.eq.s32.totalorder %v1507, %v58
    %vm1550 = vcmp.eq.s32.totalorder %v1510, %v58
    %vm1551 = vcmp.eq.s32.totalorder %v1513, %v58
    %vm1552 = vcmp.eq.s32.totalorder %v1516, %v58
    %vm1553 = vcmp.eq.s32.totalorder %v1519, %v58
    %vm1554 = vcmp.eq.s32.totalorder %v1522, %v58
    %vm1555 = vcmp.eq.s32.totalorder %v1525, %v58
    %vm1556 = vcmp.eq.s32.totalorder %v1528, %v58
    %vm1557 = vcmp.eq.s32.totalorder %v1531, %v58
    %vm1558 = vcmp.eq.s32.totalorder %v1534, %v58
    %vm1559 = vcmp.eq.s32.totalorder %v1537, %v58
    %vm1560 = vcmp.eq.s32.totalorder %v1540, %v58
    %vm1561 = vcmp.eq.s32.totalorder %v1543, %v58
    %vm1562 = vcmp.eq.s32.totalorder %v1546, %v58
    %v1563 = vsel %vm1547, 1.0, 0.0
    %v1564 = vsel %vm1548, 1.0, 0.0
    %v1565 = vsel %vm1549, 1.0, 0.0
    %v1566 = vsel %vm1550, 1.0, 0.0
    %v1567 = vsel %vm1551, 1.0, 0.0
    %v1568 = vsel %vm1552, 1.0, 0.0
    %v1569 = vsel %vm1553, 1.0, 0.0
    %v1570 = vsel %vm1554, 1.0, 0.0
    %v1571 = vsel %vm1555, 1.0, 0.0
    %v1572 = vsel %vm1556, 1.0, 0.0
    %v1573 = vsel %vm1557, 1.0, 0.0
    %v1574 = vsel %vm1558, 1.0, 0.0
    %v1575 = vsel %vm1559, 1.0, 0.0
    %v1576 = vsel %vm1560, 1.0, 0.0
    %v1577 = vsel %vm1561, 1.0, 0.0
    %v1578 = vsel %vm1562, 1.0, 0.0
    %v1579 = vadd.f32 %v1483, %v1563
    %v1580 = vadd.f32 %v1484, %v1564
    %v1581 = vadd.f32 %v1485, %v1565
    %v1582 = vadd.f32 %v1486, %v1566
    %v1583 = vadd.f32 %v1487, %v1567
    %v1584 = vadd.f32 %v1488, %v1568
    %v1585 = vadd.f32 %v1489, %v1569
    %v1586 = vadd.f32 %v1490, %v1570
    %v1587 = vadd.f32 %v1491, %v1571
    %v1588 = vadd.f32 %v1492, %v1572
    %v1589 = vadd.f32 %v1493, %v1573
    %v1590 = vadd.f32 %v1494, %v1574
    %v1591 = vadd.f32 %v1495, %v1575
    %v1592 = vadd.f32 %v1496, %v1576
    %v1593 = vadd.f32 %v1497, %v1577
    %v1594 = vadd.f32 %v1498, %v1578
    %v1595 = vld [vmem:[%s2] sm:$0xff]
    %v1596 = vld [vmem:[%s2 + $0x8] sm:$0xff]
    %v1597 = vld [vmem:[%s2 + $0x10] sm:$0xff]
    %v1598 = vld [vmem:[%s2 + $0x18] sm:$0xff]
    %v1599 = vld [vmem:[%s2 + $0x20] sm:$0xff]
    %v1600 = vld [vmem:[%s2 + $0x28] sm:$0xff]
    %v1601 = vld [vmem:[%s2 + $0x30] sm:$0xff]
    %v1602 = vld [vmem:[%s2 + $0x38] sm:$0xff]
    %v1603 = vld [vmem:[%s2 + $0x40] sm:$0xff]
    %v1604 = vld [vmem:[%s2 + $0x48] sm:$0xff]
    %v1605 = vld [vmem:[%s2 + $0x50] sm:$0xff]
    %v1606 = vld [vmem:[%s2 + $0x58] sm:$0xff]
    %v1607 = vld [vmem:[%s2 + $0x60] sm:$0xff]
    %v1608 = vld [vmem:[%s2 + $0x68] sm:$0xff]
    %v1609 = vld [vmem:[%s2 + $0x70] sm:$0xff]
    %v1610 = vld [vmem:[%s2 + $0x78] sm:$0xff]
    %1611 = vmatprep.subr.mxu0 0.0
    %1612 = vmatpush1.msra.mxu0 %v1595
    %1613 = vmatprep.subr.mxu0 0.0
    %1614 = vmatpush1.msra.mxu0 %v1596
    %1615 = vmatprep.subr.mxu0 0.0
    %1616 = vmatpush1.msra.mxu0 %v1597
    %1617 = vmatprep.subr.mxu0 0.0
    %1618 = vmatpush1.msra.mxu0 %v1598
    %1619 = vmatprep.subr.mxu0 0.0
    %1620 = vmatpush1.msra.mxu0 %v1599
    %1621 = vmatprep.subr.mxu0 0.0
    %1622 = vmatpush1.msra.mxu0 %v1600
    %1623 = vmatprep.subr.mxu0 0.0
    %1624 = vmatpush1.msra.mxu0 %v1601
    %1625 = vmatprep.subr.mxu0 0.0
    %1626 = vmatpush1.msra.mxu0 %v1602
    %1627 = vmatprep.subr.mxu0 0.0
    %1628 = vmatpush1.msra.mxu0 %v1603
    %1629 = vmatprep.subr.mxu0 0.0
    %1630 = vmatpush1.msra.mxu0 %v1604
    %1631 = vmatprep.subr.mxu0 0.0
    %1632 = vmatpush1.msra.mxu0 %v1605
    %1633 = vmatprep.subr.mxu0 0.0
    %1634 = vmatpush1.msra.mxu0 %v1606
    %1635 = vmatprep.subr.mxu0 0.0
    %1636 = vmatpush1.msra.mxu0 %v1607
    %1637 = vmatprep.subr.mxu0 0.0
    %1638 = vmatpush1.msra.mxu0 %v1608
    %1639 = vmatprep.subr.mxu0 0.0
    %1640 = vmatpush1.msra.mxu0 %v1609
    %1641 = vmatprep.subr.mxu0 0.0
    %1642 = vmatpush1.msra.mxu0 %v1610
    %1643 = vmatprep.subr.mxu0 0.0
    %1644 = vmatpush1.msra.mxu0 0.0
    %1645 = vmatprep.subr.mxu0 0.0
    %1646 = vmatpush1.msra.mxu0 0.0
    %1647 = vmatprep.subr.mxu0 0.0
    %1648 = vmatpush1.msra.mxu0 0.0
    %1649 = vmatprep.subr.mxu0 0.0
    %1650 = vmatpush1.msra.mxu0 0.0
    %1651 = vmatprep.subr.mxu0 0.0
    %1652 = vmatpush1.msra.mxu0 0.0
    %1653 = vmatprep.subr.mxu0 0.0
    %1654 = vmatpush1.msra.mxu0 0.0
    %1655 = vmatprep.subr.mxu0 0.0
    %1656 = vmatpush1.msra.mxu0 0.0
    %1657 = vmatprep.subr.mxu0 0.0
    %1658 = vmatpush1.msra.mxu0 0.0
    %1659 = vmatprep.subr.mxu0 0.0
    %1660 = vmatpush1.msra.mxu0 0.0
    %1661 = vmatprep.subr.mxu0 0.0
    %1662 = vmatpush1.msra.mxu0 0.0
    %1663 = vmatprep.subr.mxu0 0.0
    %1664 = vmatpush1.msra.mxu0 0.0
    %1665 = vmatprep.subr.mxu0 0.0
    %1666 = vmatpush1.msra.mxu0 0.0
    %1667 = vmatprep.subr.mxu0 0.0
    %1668 = vmatpush1.msra.mxu0 0.0
    %1669 = vmatprep.subr.mxu0 0.0
    %1670 = vmatpush1.msra.mxu0 0.0
    %1671 = vmatprep.subr.mxu0 0.0
    %1672 = vmatpush1.msra.mxu0 0.0
    %1673 = vmatprep.subr.mxu0 0.0
    %1674 = vmatpush1.msra.mxu0 0.0
    %1675 = vmatprep.mubr.f32.mxu0 0.0
    %1676 = vmatmul.mubr.f32.gmra.mrb[0].mxu0 %v1579
    %v1677 = vpop.f32.mrb[0].mxu0
    %v1678 = vadd.f32 0.0, %v1677
    %v1679 = vpop.f32.mrb[0].mxu0
    %1680 = vmatprep.mubr.f32.mxu0 0.0
    %1681 = vmatmul.mubr.f32.gmra.mrb[0].mxu0 %v1580
    %v1682 = vpop.f32.mrb[0].mxu0
    %v1683 = vadd.f32 0.0, %v1682
    %v1684 = vpop.f32.mrb[0].mxu0
    %1685 = vmatprep.mubr.f32.mxu0 0.0
    %1686 = vmatmul.mubr.f32.gmra.mrb[0].mxu0 %v1581
    %v1687 = vpop.f32.mrb[0].mxu0
    %v1688 = vadd.f32 0.0, %v1687
    %v1689 = vpop.f32.mrb[0].mxu0
    %1690 = vmatprep.mubr.f32.mxu0 0.0
    %1691 = vmatmul.mubr.f32.gmra.mrb[0].mxu0 %v1582
    %v1692 = vpop.f32.mrb[0].mxu0
    %v1693 = vadd.f32 0.0, %v1692
    %v1694 = vpop.f32.mrb[0].mxu0
    %1695 = vmatprep.mubr.f32.mxu0 0.0
    %1696 = vmatmul.mubr.f32.gmra.mrb[0].mxu0 %v1583
    %v1697 = vpop.f32.mrb[0].mxu0
    %v1698 = vadd.f32 0.0, %v1697
    %v1699 = vpop.f32.mrb[0].mxu0
    %1700 = vmatprep.mubr.f32.mxu0 0.0
    %1701 = vmatmul.mubr.f32.gmra.mrb[0].mxu0 %v1584
    %v1702 = vpop.f32.mrb[0].mxu0
    %v1703 = vadd.f32 0.0, %v1702
    %v1704 = vpop.f32.mrb[0].mxu0
    %1705 = vmatprep.mubr.f32.mxu0 0.0
    %1706 = vmatmul.mubr.f32.gmra.mrb[0].mxu0 %v1585
    %v1707 = vpop.f32.mrb[0].mxu0
    %v1708 = vadd.f32 0.0, %v1707
    %v1709 = vpop.f32.mrb[0].mxu0
    %1710 = vmatprep.mubr.f32.mxu0 0.0
    %1711 = vmatmul.mubr.f32.gmra.mrb[0].mxu0 %v1586
    %v1712 = vpop.f32.mrb[0].mxu0
    %v1713 = vadd.f32 0.0, %v1712
    %v1714 = vpop.f32.mrb[0].mxu0
    %1715 = vmatprep.mubr.f32.mxu0 0.0
    %1716 = vmatmul.mubr.f32.gmra.mrb[0].mxu0 %v1587
    %v1717 = vpop.f32.mrb[0].mxu0
    %v1718 = vadd.f32 0.0, %v1717
    %v1719 = vpop.f32.mrb[0].mxu0
    %1720 = vmatprep.mubr.f32.mxu0 0.0
    %1721 = vmatmul.mubr.f32.gmra.mrb[0].mxu0 %v1588
    %v1722 = vpop.f32.mrb[0].mxu0
    %v1723 = vadd.f32 0.0, %v1722
    %v1724 = vpop.f32.mrb[0].mxu0
    %1725 = vmatprep.mubr.f32.mxu0 0.0
    %1726 = vmatmul.mubr.f32.gmra.mrb[0].mxu0 %v1589
    %v1727 = vpop.f32.mrb[0].mxu0
    %v1728 = vadd.f32 0.0, %v1727
    %v1729 = vpop.f32.mrb[0].mxu0
    %1730 = vmatprep.mubr.f32.mxu0 0.0
    %1731 = vmatmul.mubr.f32.gmra.mrb[0].mxu0 %v1590
    %v1732 = vpop.f32.mrb[0].mxu0
    %v1733 = vadd.f32 0.0, %v1732
    %v1734 = vpop.f32.mrb[0].mxu0
    %1735 = vmatprep.mubr.f32.mxu0 0.0
    %1736 = vmatmul.mubr.f32.gmra.mrb[0].mxu0 %v1591
    %v1737 = vpop.f32.mrb[0].mxu0
    %v1738 = vadd.f32 0.0, %v1737
    %v1739 = vpop.f32.mrb[0].mxu0
    %1740 = vmatprep.mubr.f32.mxu0 0.0
    %1741 = vmatmul.mubr.f32.gmra.mrb[0].mxu0 %v1592
    %v1742 = vpop.f32.mrb[0].mxu0
    %v1743 = vadd.f32 0.0, %v1742
    %v1744 = vpop.f32.mrb[0].mxu0
    %1745 = vmatprep.mubr.f32.mxu0 0.0
    %1746 = vmatmul.mubr.f32.gmra.mrb[0].mxu0 %v1593
    %v1747 = vpop.f32.mrb[0].mxu0
    %v1748 = vadd.f32 0.0, %v1747
    %v1749 = vpop.f32.mrb[0].mxu0
    %1750 = vmatprep.mubr.f32.mxu0 0.0
    %1751 = vmatmul.mubr.f32.gmra.mrb[0].mxu0 %v1594
    %v1752 = vpop.f32.mrb[0].mxu0
    %v1753 = vadd.f32 0.0, %v1752
    %v1754 = vpop.f32.mrb[0].mxu0
    %1755 = vdwg.mxu0
    %v1756 = vld [vmem:[%s1] sm:$0xff]
    %v1757 = vld [vmem:[%s1 + $0x8] sm:$0xff]
    %v1758 = vld [vmem:[%s1 + $0x10] sm:$0xff]
    %v1759 = vld [vmem:[%s1 + $0x18] sm:$0xff]
    %v1760 = vld [vmem:[%s1 + $0x20] sm:$0xff]
    %v1761 = vld [vmem:[%s1 + $0x28] sm:$0xff]
    %v1762 = vld [vmem:[%s1 + $0x30] sm:$0xff]
    %v1763 = vld [vmem:[%s1 + $0x38] sm:$0xff]
    %v1764 = vld [vmem:[%s1 + $0x40] sm:$0xff]
    %v1765 = vld [vmem:[%s1 + $0x48] sm:$0xff]
    %v1766 = vld [vmem:[%s1 + $0x50] sm:$0xff]
    %v1767 = vld [vmem:[%s1 + $0x58] sm:$0xff]
    %v1768 = vld [vmem:[%s1 + $0x60] sm:$0xff]
    %v1769 = vld [vmem:[%s1 + $0x68] sm:$0xff]
    %v1770 = vld [vmem:[%s1 + $0x70] sm:$0xff]
    %v1771 = vld [vmem:[%s1 + $0x78] sm:$0xff]
    %v1772 = vmax.f32 %v1756, 1.0
    %v1773 = vmax.f32 %v1757, 1.0
    %v1774 = vmax.f32 %v1758, 1.0
    %v1775 = vmax.f32 %v1759, 1.0
    %v1776 = vmax.f32 %v1760, 1.0
    %v1777 = vmax.f32 %v1761, 1.0
    %v1778 = vmax.f32 %v1762, 1.0
    %v1779 = vmax.f32 %v1763, 1.0
    %v1780 = vmax.f32 %v1764, 1.0
    %v1781 = vmax.f32 %v1765, 1.0
    %v1782 = vmax.f32 %v1766, 1.0
    %v1783 = vmax.f32 %v1767, 1.0
    %v1784 = vmax.f32 %v1768, 1.0
    %v1785 = vmax.f32 %v1769, 1.0
    %v1786 = vmax.f32 %v1770, 1.0
    %v1787 = vmax.f32 %v1771, 1.0
    %v1788 = vrcp.pop %v1772
    %v1789 = vrcp.pop %v1773
    %v1790 = vrcp.pop %v1774
    %v1791 = vrcp.pop %v1775
    %v1792 = vrcp.pop %v1776
    %v1793 = vrcp.pop %v1777
    %v1794 = vrcp.pop %v1778
    %v1795 = vrcp.pop %v1779
    %v1796 = vrcp.pop %v1780
    %v1797 = vrcp.pop %v1781
    %v1798 = vrcp.pop %v1782
    %v1799 = vrcp.pop %v1783
    %v1800 = vrcp.pop %v1784
    %v1801 = vrcp.pop %v1785
    %v1802 = vrcp.pop %v1786
    %v1803 = vrcp.pop %v1787
    %1805 = vset.pattern.permute.xlu0 0
    %1806 = vperm.xlu0 %1805, %v1788
    %v1807 = vpop.permute.xlu0 %1806
    %1810 = vset.pattern.permute.xlu0 0
    %1811 = vperm.xlu0 %1810, %v1789
    %v1812 = vpop.permute.xlu0 %1811
    %1815 = vset.pattern.permute.xlu0 0
    %1816 = vperm.xlu0 %1815, %v1790
    %v1817 = vpop.permute.xlu0 %1816
    %1820 = vset.pattern.permute.xlu0 0
    %1821 = vperm.xlu0 %1820, %v1791
    %v1822 = vpop.permute.xlu0 %1821
    %1825 = vset.pattern.permute.xlu0 0
    %1826 = vperm.xlu0 %1825, %v1792
    %v1827 = vpop.permute.xlu0 %1826
    %1830 = vset.pattern.permute.xlu0 0
    %1831 = vperm.xlu0 %1830, %v1793
    %v1832 = vpop.permute.xlu0 %1831
    %1835 = vset.pattern.permute.xlu0 0
    %1836 = vperm.xlu0 %1835, %v1794
    %v1837 = vpop.permute.xlu0 %1836
    %1840 = vset.pattern.permute.xlu0 0
    %1841 = vperm.xlu0 %1840, %v1795
    %v1842 = vpop.permute.xlu0 %1841
    %1845 = vset.pattern.permute.xlu0 0
    %1846 = vperm.xlu0 %1845, %v1796
    %v1847 = vpop.permute.xlu0 %1846
    %1850 = vset.pattern.permute.xlu0 0
    %1851 = vperm.xlu0 %1850, %v1797
    %v1852 = vpop.permute.xlu0 %1851
    %1855 = vset.pattern.permute.xlu0 0
    %1856 = vperm.xlu0 %1855, %v1798
    %v1857 = vpop.permute.xlu0 %1856
    %1860 = vset.pattern.permute.xlu0 0
    %1861 = vperm.xlu0 %1860, %v1799
    %v1862 = vpop.permute.xlu0 %1861
    %1865 = vset.pattern.permute.xlu0 0
    %1866 = vperm.xlu0 %1865, %v1800
    %v1867 = vpop.permute.xlu0 %1866
    %1870 = vset.pattern.permute.xlu0 0
    %1871 = vperm.xlu0 %1870, %v1801
    %v1872 = vpop.permute.xlu0 %1871
    %1875 = vset.pattern.permute.xlu0 0
    %1876 = vperm.xlu0 %1875, %v1802
    %v1877 = vpop.permute.xlu0 %1876
    %1880 = vset.pattern.permute.xlu0 0
    %1881 = vperm.xlu0 %1880, %v1803
    %v1882 = vpop.permute.xlu0 %1881
    %v1884 = vmul.f32 %v1678, %v1807
    %v1885 = vmul.f32 %v1683, %v1812
    %v1886 = vmul.f32 %v1688, %v1817
    %v1887 = vmul.f32 %v1693, %v1822
    %v1888 = vmul.f32 %v1698, %v1827
    %v1889 = vmul.f32 %v1703, %v1832
    %v1890 = vmul.f32 %v1708, %v1837
    %v1891 = vmul.f32 %v1713, %v1842
    %v1892 = vmul.f32 %v1718, %v1847
    %v1893 = vmul.f32 %v1723, %v1852
    %v1894 = vmul.f32 %v1728, %v1857
    %v1895 = vmul.f32 %v1733, %v1862
    %v1896 = vmul.f32 %v1738, %v1867
    %v1897 = vmul.f32 %v1743, %v1872
    %v1898 = vmul.f32 %v1748, %v1877
    %v1899 = vmul.f32 %v1753, %v1882
    %v1900 = vld [vmem:[%s3] sm:$0xff]
    %v1901 = vld [vmem:[%s3 + $0x8] sm:$0xff]
    %v1902 = vld [vmem:[%s3 + $0x10] sm:$0xff]
    %v1903 = vld [vmem:[%s3 + $0x18] sm:$0xff]
    %v1904 = vld [vmem:[%s3 + $0x20] sm:$0xff]
    %v1905 = vld [vmem:[%s3 + $0x28] sm:$0xff]
    %v1906 = vld [vmem:[%s3 + $0x30] sm:$0xff]
    %v1907 = vld [vmem:[%s3 + $0x38] sm:$0xff]
    %v1908 = vld [vmem:[%s3 + $0x40] sm:$0xff]
    %v1909 = vld [vmem:[%s3 + $0x48] sm:$0xff]
    %v1910 = vld [vmem:[%s3 + $0x50] sm:$0xff]
    %v1911 = vld [vmem:[%s3 + $0x58] sm:$0xff]
    %v1912 = vld [vmem:[%s3 + $0x60] sm:$0xff]
    %v1913 = vld [vmem:[%s3 + $0x68] sm:$0xff]
    %v1914 = vld [vmem:[%s3 + $0x70] sm:$0xff]
    %v1915 = vld [vmem:[%s3 + $0x78] sm:$0xff]
    %v1916 = vld [vmem:[%s4] sm:$0x1]
    %v1918 = vlaneseq
    %v1919 = vshrl.u32 %v1918, 7
    %v1920 = vsub.s32 0, %v1919
    %v1921 = vrot.slane %v1916, %v1920
    %1923 = vmatprep.subr.mxu0 0.0
    %1924 = vmatpush1.msra.mxu0 %v1900
    %1925 = vmatprep.subr.mxu0 0.0
    %1926 = vmatpush1.msra.mxu0 %v1901
    %1927 = vmatprep.subr.mxu0 0.0
    %1928 = vmatpush1.msra.mxu0 %v1902
    %1929 = vmatprep.subr.mxu0 0.0
    %1930 = vmatpush1.msra.mxu0 %v1903
    %1931 = vmatprep.subr.mxu0 0.0
    %1932 = vmatpush1.msra.mxu0 %v1904
    %1933 = vmatprep.subr.mxu0 0.0
    %1934 = vmatpush1.msra.mxu0 %v1905
    %1935 = vmatprep.subr.mxu0 0.0
    %1936 = vmatpush1.msra.mxu0 %v1906
    %1937 = vmatprep.subr.mxu0 0.0
    %1938 = vmatpush1.msra.mxu0 %v1907
    %1939 = vmatprep.subr.mxu0 0.0
    %1940 = vmatpush1.msra.mxu0 %v1908
    %1941 = vmatprep.subr.mxu0 0.0
    %1942 = vmatpush1.msra.mxu0 %v1909
    %1943 = vmatprep.subr.mxu0 0.0
    %1944 = vmatpush1.msra.mxu0 %v1910
    %1945 = vmatprep.subr.mxu0 0.0
    %1946 = vmatpush1.msra.mxu0 %v1911
    %1947 = vmatprep.subr.mxu0 0.0
    %1948 = vmatpush1.msra.mxu0 %v1912
    %1949 = vmatprep.subr.mxu0 0.0
    %1950 = vmatpush1.msra.mxu0 %v1913
    %1951 = vmatprep.subr.mxu0 0.0
    %1952 = vmatpush1.msra.mxu0 %v1914
    %1953 = vmatprep.subr.mxu0 0.0
    %1954 = vmatpush1.msra.mxu0 %v1915
    %1955 = vmatprep.subr.mxu0 0.0
    %1956 = vmatpush1.msra.mxu0 0.0
    %1957 = vmatprep.subr.mxu0 0.0
    %1958 = vmatpush1.msra.mxu0 0.0
    %1959 = vmatprep.subr.mxu0 0.0
    %1960 = vmatpush1.msra.mxu0 0.0
    %1961 = vmatprep.subr.mxu0 0.0
    %1962 = vmatpush1.msra.mxu0 0.0
    %1963 = vmatprep.subr.mxu0 0.0
    %1964 = vmatpush1.msra.mxu0 0.0
    %1965 = vmatprep.subr.mxu0 0.0
    %1966 = vmatpush1.msra.mxu0 0.0
    %1967 = vmatprep.subr.mxu0 0.0
    %1968 = vmatpush1.msra.mxu0 0.0
    %1969 = vmatprep.subr.mxu0 0.0
    %1970 = vmatpush1.msra.mxu0 0.0
    %1971 = vmatprep.subr.mxu0 0.0
    %1972 = vmatpush1.msra.mxu0 0.0
    %1973 = vmatprep.subr.mxu0 0.0
    %1974 = vmatpush1.msra.mxu0 0.0
    %1975 = vmatprep.subr.mxu0 0.0
    %1976 = vmatpush1.msra.mxu0 0.0
    %1977 = vmatprep.subr.mxu0 0.0
    %1978 = vmatpush1.msra.mxu0 0.0
    %1979 = vmatprep.subr.mxu0 0.0
    %1980 = vmatpush1.msra.mxu0 0.0
    %1981 = vmatprep.subr.mxu0 0.0
    %1982 = vmatpush1.msra.mxu0 0.0
    %1983 = vmatprep.subr.mxu0 0.0
    %1984 = vmatpush1.msra.mxu0 0.0
    %1985 = vmatprep.subr.mxu0 0.0
    %1986 = vmatpush1.msra.mxu0 0.0
    %1987 = vmatprep.mubr.f32.mxu0 0.0
    %1988 = vmatmul.mubr.f32.gmra.mrb[0].mxu0 %v1884
    %v1989 = vpop.f32.mrb[0].mxu0
    %v1990 = vadd.f32 %v1921, %v1989
    %v1991 = vpop.f32.mrb[0].mxu0
    %1992 = vmatprep.mubr.f32.mxu0 0.0
    %1993 = vmatmul.mubr.f32.gmra.mrb[0].mxu0 %v1885
    %v1994 = vpop.f32.mrb[0].mxu0
    %v1995 = vadd.f32 %v1921, %v1994
    %v1996 = vpop.f32.mrb[0].mxu0
    %1997 = vmatprep.mubr.f32.mxu0 0.0
    %1998 = vmatmul.mubr.f32.gmra.mrb[0].mxu0 %v1886
    %v1999 = vpop.f32.mrb[0].mxu0
    %v2000 = vadd.f32 %v1921, %v1999
    %v2001 = vpop.f32.mrb[0].mxu0
    %2002 = vmatprep.mubr.f32.mxu0 0.0
    %2003 = vmatmul.mubr.f32.gmra.mrb[0].mxu0 %v1887
    %v2004 = vpop.f32.mrb[0].mxu0
    %v2005 = vadd.f32 %v1921, %v2004
    %v2006 = vpop.f32.mrb[0].mxu0
    %2007 = vmatprep.mubr.f32.mxu0 0.0
    %2008 = vmatmul.mubr.f32.gmra.mrb[0].mxu0 %v1888
    %v2009 = vpop.f32.mrb[0].mxu0
    %v2010 = vadd.f32 %v1921, %v2009
    %v2011 = vpop.f32.mrb[0].mxu0
    %2012 = vmatprep.mubr.f32.mxu0 0.0
    %2013 = vmatmul.mubr.f32.gmra.mrb[0].mxu0 %v1889
    %v2014 = vpop.f32.mrb[0].mxu0
    %v2015 = vadd.f32 %v1921, %v2014
    %v2016 = vpop.f32.mrb[0].mxu0
    %2017 = vmatprep.mubr.f32.mxu0 0.0
    %2018 = vmatmul.mubr.f32.gmra.mrb[0].mxu0 %v1890
    %v2019 = vpop.f32.mrb[0].mxu0
    %v2020 = vadd.f32 %v1921, %v2019
    %v2021 = vpop.f32.mrb[0].mxu0
    %2022 = vmatprep.mubr.f32.mxu0 0.0
    %2023 = vmatmul.mubr.f32.gmra.mrb[0].mxu0 %v1891
    %v2024 = vpop.f32.mrb[0].mxu0
    %v2025 = vadd.f32 %v1921, %v2024
    %v2026 = vpop.f32.mrb[0].mxu0
    %2027 = vmatprep.mubr.f32.mxu0 0.0
    %2028 = vmatmul.mubr.f32.gmra.mrb[0].mxu0 %v1892
    %v2029 = vpop.f32.mrb[0].mxu0
    %v2030 = vadd.f32 %v1921, %v2029
    %v2031 = vpop.f32.mrb[0].mxu0
    %2032 = vmatprep.mubr.f32.mxu0 0.0
    %2033 = vmatmul.mubr.f32.gmra.mrb[0].mxu0 %v1893
    %v2034 = vpop.f32.mrb[0].mxu0
    %v2035 = vadd.f32 %v1921, %v2034
    %v2036 = vpop.f32.mrb[0].mxu0
    %2037 = vmatprep.mubr.f32.mxu0 0.0
    %2038 = vmatmul.mubr.f32.gmra.mrb[0].mxu0 %v1894
    %v2039 = vpop.f32.mrb[0].mxu0
    %v2040 = vadd.f32 %v1921, %v2039
    %v2041 = vpop.f32.mrb[0].mxu0
    %2042 = vmatprep.mubr.f32.mxu0 0.0
    %2043 = vmatmul.mubr.f32.gmra.mrb[0].mxu0 %v1895
    %v2044 = vpop.f32.mrb[0].mxu0
    %v2045 = vadd.f32 %v1921, %v2044
    %v2046 = vpop.f32.mrb[0].mxu0
    %2047 = vmatprep.mubr.f32.mxu0 0.0
    %2048 = vmatmul.mubr.f32.gmra.mrb[0].mxu0 %v1896
    %v2049 = vpop.f32.mrb[0].mxu0
    %v2050 = vadd.f32 %v1921, %v2049
    %v2051 = vpop.f32.mrb[0].mxu0
    %2052 = vmatprep.mubr.f32.mxu0 0.0
    %2053 = vmatmul.mubr.f32.gmra.mrb[0].mxu0 %v1897
    %v2054 = vpop.f32.mrb[0].mxu0
    %v2055 = vadd.f32 %v1921, %v2054
    %v2056 = vpop.f32.mrb[0].mxu0
    %2057 = vmatprep.mubr.f32.mxu0 0.0
    %2058 = vmatmul.mubr.f32.gmra.mrb[0].mxu0 %v1898
    %v2059 = vpop.f32.mrb[0].mxu0
    %v2060 = vadd.f32 %v1921, %v2059
    %v2061 = vpop.f32.mrb[0].mxu0
    %2062 = vmatprep.mubr.f32.mxu0 0.0
    %2063 = vmatmul.mubr.f32.gmra.mrb[0].mxu0 %v1899
    %v2064 = vpop.f32.mrb[0].mxu0
    %v2065 = vadd.f32 %v1921, %v2064
    %v2066 = vpop.f32.mrb[0].mxu0
    %2067 = vdwg.mxu0
    %v2068 = vmax.f32 %v1990, 0.0
    %v2069 = vmax.f32 %v1995, 0.0
    %v2070 = vmax.f32 %v2000, 0.0
    %v2071 = vmax.f32 %v2005, 0.0
    %v2072 = vmax.f32 %v2010, 0.0
    %v2073 = vmax.f32 %v2015, 0.0
    %v2074 = vmax.f32 %v2020, 0.0
    %v2075 = vmax.f32 %v2025, 0.0
    %v2076 = vmax.f32 %v2030, 0.0
    %v2077 = vmax.f32 %v2035, 0.0
    %v2078 = vmax.f32 %v2040, 0.0
    %v2079 = vmax.f32 %v2045, 0.0
    %v2080 = vmax.f32 %v2050, 0.0
    %v2081 = vmax.f32 %v2055, 0.0
    %v2082 = vmax.f32 %v2060, 0.0
    %v2083 = vmax.f32 %v2065, 0.0
    %v2084 = vld [vmem:[#allocation2] sm:$0xff]
    %v2085 = vld [vmem:[#allocation2 + $0x8] sm:$0xff]
    %v2086 = vld [vmem:[#allocation2 + $0x10] sm:$0xff]
    %v2087 = vld [vmem:[#allocation2 + $0x18] sm:$0xff]
    %v2088 = vld [vmem:[#allocation2 + $0x20] sm:$0xff]
    %v2089 = vld [vmem:[#allocation2 + $0x28] sm:$0xff]
    %v2090 = vld [vmem:[#allocation2 + $0x30] sm:$0xff]
    %v2091 = vld [vmem:[#allocation2 + $0x38] sm:$0xff]
    %v2092 = vld [vmem:[#allocation2 + $0x40] sm:$0xff]
    %v2093 = vld [vmem:[#allocation2 + $0x48] sm:$0xff]
    %v2094 = vld [vmem:[#allocation2 + $0x50] sm:$0xff]
    %v2095 = vld [vmem:[#allocation2 + $0x58] sm:$0xff]
    %v2096 = vld [vmem:[#allocation2 + $0x60] sm:$0xff]
    %v2097 = vld [vmem:[#allocation2 + $0x68] sm:$0xff]
    %v2098 = vld [vmem:[#allocation2 + $0x70] sm:$0xff]
    %v2099 = vld [vmem:[#allocation2 + $0x78] sm:$0xff]
    %v2100 = vld [vmem:[%s6] sm:$0x1]
    %v2102 = vlaneseq
    %v2103 = vshrl.u32 %v2102, 7
    %v2104 = vsub.s32 0, %v2103
    %v2105 = vrot.slane %v2100, %v2104
    %2107 = vmatprep.subr.mxu0 0.0
    %2108 = vmatpush1.msra.mxu0 %v2084
    %2109 = vmatprep.subr.mxu0 0.0
    %2110 = vmatpush1.msra.mxu0 %v2085
    %2111 = vmatprep.subr.mxu0 0.0
    %2112 = vmatpush1.msra.mxu0 %v2086
    %2113 = vmatprep.subr.mxu0 0.0
    %2114 = vmatpush1.msra.mxu0 %v2087
    %2115 = vmatprep.subr.mxu0 0.0
    %2116 = vmatpush1.msra.mxu0 %v2088
    %2117 = vmatprep.subr.mxu0 0.0
    %2118 = vmatpush1.msra.mxu0 %v2089
    %2119 = vmatprep.subr.mxu0 0.0
    %2120 = vmatpush1.msra.mxu0 %v2090
    %2121 = vmatprep.subr.mxu0 0.0
    %2122 = vmatpush1.msra.mxu0 %v2091
    %2123 = vmatprep.subr.mxu0 0.0
    %2124 = vmatpush1.msra.mxu0 %v2092
    %2125 = vmatprep.subr.mxu0 0.0
    %2126 = vmatpush1.msra.mxu0 %v2093
    %2127 = vmatprep.subr.mxu0 0.0
    %2128 = vmatpush1.msra.mxu0 %v2094
    %2129 = vmatprep.subr.mxu0 0.0
    %2130 = vmatpush1.msra.mxu0 %v2095
    %2131 = vmatprep.subr.mxu0 0.0
    %2132 = vmatpush1.msra.mxu0 %v2096
    %2133 = vmatprep.subr.mxu0 0.0
    %2134 = vmatpush1.msra.mxu0 %v2097
    %2135 = vmatprep.subr.mxu0 0.0
    %2136 = vmatpush1.msra.mxu0 %v2098
    %2137 = vmatprep.subr.mxu0 0.0
    %2138 = vmatpush1.msra.mxu0 %v2099
    %2139 = vmatprep.subr.mxu0 0.0
    %2140 = vmatpush1.msra.mxu0 0.0
    %2141 = vmatprep.subr.mxu0 0.0
    %2142 = vmatpush1.msra.mxu0 0.0
    %2143 = vmatprep.subr.mxu0 0.0
    %2144 = vmatpush1.msra.mxu0 0.0
    %2145 = vmatprep.subr.mxu0 0.0
    %2146 = vmatpush1.msra.mxu0 0.0
    %2147 = vmatprep.subr.mxu0 0.0
    %2148 = vmatpush1.msra.mxu0 0.0
    %2149 = vmatprep.subr.mxu0 0.0
    %2150 = vmatpush1.msra.mxu0 0.0
    %2151 = vmatprep.subr.mxu0 0.0
    %2152 = vmatpush1.msra.mxu0 0.0
    %2153 = vmatprep.subr.mxu0 0.0
    %2154 = vmatpush1.msra.mxu0 0.0
    %2155 = vmatprep.subr.mxu0 0.0
    %2156 = vmatpush1.msra.mxu0 0.0
    %2157 = vmatprep.subr.mxu0 0.0
    %2158 = vmatpush1.msra.mxu0 0.0
    %2159 = vmatprep.subr.mxu0 0.0
    %2160 = vmatpush1.msra.mxu0 0.0
    %2161 = vmatprep.subr.mxu0 0.0
    %2162 = vmatpush1.msra.mxu0 0.0
    %2163 = vmatprep.subr.mxu0 0.0
    %2164 = vmatpush1.msra.mxu0 0.0
    %2165 = vmatprep.subr.mxu0 0.0
    %2166 = vmatpush1.msra.mxu0 0.0
    %2167 = vmatprep.subr.mxu0 0.0
    %2168 = vmatpush1.msra.mxu0 0.0
    %2169 = vmatprep.subr.mxu0 0.0
    %2170 = vmatpush1.msra.mxu0 0.0
    %2171 = vmatprep.mubr.f32.mxu0 0.0
    %2172 = vmatmul.mubr.f32.gmra.mrb[0].mxu0 %v2068
    %v2173 = vpop.f32.mrb[0].mxu0
    %v2174 = vadd.f32 %v2105, %v2173
    %v2175 = vpop.f32.mrb[0].mxu0
    %2176 = vmatprep.mubr.f32.mxu0 0.0
    %2177 = vmatmul.mubr.f32.gmra.mrb[0].mxu0 %v2069
    %v2178 = vpop.f32.mrb[0].mxu0
    %v2179 = vadd.f32 %v2105, %v2178
    %v2180 = vpop.f32.mrb[0].mxu0
    %2181 = vmatprep.mubr.f32.mxu0 0.0
    %2182 = vmatmul.mubr.f32.gmra.mrb[0].mxu0 %v2070
    %v2183 = vpop.f32.mrb[0].mxu0
    %v2184 = vadd.f32 %v2105, %v2183
    %v2185 = vpop.f32.mrb[0].mxu0
    %2186 = vmatprep.mubr.f32.mxu0 0.0
    %2187 = vmatmul.mubr.f32.gmra.mrb[0].mxu0 %v2071
    %v2188 = vpop.f32.mrb[0].mxu0
    %v2189 = vadd.f32 %v2105, %v2188
    %v2190 = vpop.f32.mrb[0].mxu0
    %2191 = vmatprep.mubr.f32.mxu0 0.0
    %2192 = vmatmul.mubr.f32.gmra.mrb[0].mxu0 %v2072
    %v2193 = vpop.f32.mrb[0].mxu0
    %v2194 = vadd.f32 %v2105, %v2193
    %v2195 = vpop.f32.mrb[0].mxu0
    %2196 = vmatprep.mubr.f32.mxu0 0.0
    %2197 = vmatmul.mubr.f32.gmra.mrb[0].mxu0 %v2073
    %v2198 = vpop.f32.mrb[0].mxu0
    %v2199 = vadd.f32 %v2105, %v2198
    %v2200 = vpop.f32.mrb[0].mxu0
    %2201 = vmatprep.mubr.f32.mxu0 0.0
    %2202 = vmatmul.mubr.f32.gmra.mrb[0].mxu0 %v2074
    %v2203 = vpop.f32.mrb[0].mxu0
    %v2204 = vadd.f32 %v2105, %v2203
    %v2205 = vpop.f32.mrb[0].mxu0
    %2206 = vmatprep.mubr.f32.mxu0 0.0
    %2207 = vmatmul.mubr.f32.gmra.mrb[0].mxu0 %v2075
    %v2208 = vpop.f32.mrb[0].mxu0
    %v2209 = vadd.f32 %v2105, %v2208
    %v2210 = vpop.f32.mrb[0].mxu0
    %2211 = vmatprep.mubr.f32.mxu0 0.0
    %2212 = vmatmul.mubr.f32.gmra.mrb[0].mxu0 %v2076
    %v2213 = vpop.f32.mrb[0].mxu0
    %v2214 = vadd.f32 %v2105, %v2213
    %v2215 = vpop.f32.mrb[0].mxu0
    %2216 = vmatprep.mubr.f32.mxu0 0.0
    %2217 = vmatmul.mubr.f32.gmra.mrb[0].mxu0 %v2077
    %v2218 = vpop.f32.mrb[0].mxu0
    %v2219 = vadd.f32 %v2105, %v2218
    %v2220 = vpop.f32.mrb[0].mxu0
    %2221 = vmatprep.mubr.f32.mxu0 0.0
    %2222 = vmatmul.mubr.f32.gmra.mrb[0].mxu0 %v2078
    %v2223 = vpop.f32.mrb[0].mxu0
    %v2224 = vadd.f32 %v2105, %v2223
    %v2225 = vpop.f32.mrb[0].mxu0
    %2226 = vmatprep.mubr.f32.mxu0 0.0
    %2227 = vmatmul.mubr.f32.gmra.mrb[0].mxu0 %v2079
    %v2228 = vpop.f32.mrb[0].mxu0
    %v2229 = vadd.f32 %v2105, %v2228
    %v2230 = vpop.f32.mrb[0].mxu0
    %2231 = vmatprep.mubr.f32.mxu0 0.0
    %2232 = vmatmul.mubr.f32.gmra.mrb[0].mxu0 %v2080
    %v2233 = vpop.f32.mrb[0].mxu0
    %v2234 = vadd.f32 %v2105, %v2233
    %v2235 = vpop.f32.mrb[0].mxu0
    %2236 = vmatprep.mubr.f32.mxu0 0.0
    %2237 = vmatmul.mubr.f32.gmra.mrb[0].mxu0 %v2081
    %v2238 = vpop.f32.mrb[0].mxu0
    %v2239 = vadd.f32 %v2105, %v2238
    %v2240 = vpop.f32.mrb[0].mxu0
    %2241 = vmatprep.mubr.f32.mxu0 0.0
    %2242 = vmatmul.mubr.f32.gmra.mrb[0].mxu0 %v2082
    %v2243 = vpop.f32.mrb[0].mxu0
    %v2244 = vadd.f32 %v2105, %v2243
    %v2245 = vpop.f32.mrb[0].mxu0
    %2246 = vmatprep.mubr.f32.mxu0 0.0
    %2247 = vmatmul.mubr.f32.gmra.mrb[0].mxu0 %v2083
    %v2248 = vpop.f32.mrb[0].mxu0
    %v2249 = vadd.f32 %v2105, %v2248
    %v2250 = vpop.f32.mrb[0].mxu0
    %2251 = vdwg.mxu0
    %v2252 = vmax.f32 %v2174, 0.0
    %v2253 = vmax.f32 %v2179, 0.0
    %v2254 = vmax.f32 %v2184, 0.0
    %v2255 = vmax.f32 %v2189, 0.0
    %v2256 = vmax.f32 %v2194, 0.0
    %v2257 = vmax.f32 %v2199, 0.0
    %v2258 = vmax.f32 %v2204, 0.0
    %v2259 = vmax.f32 %v2209, 0.0
    %v2260 = vmax.f32 %v2214, 0.0
    %v2261 = vmax.f32 %v2219, 0.0
    %v2262 = vmax.f32 %v2224, 0.0
    %v2263 = vmax.f32 %v2229, 0.0
    %v2264 = vmax.f32 %v2234, 0.0
    %v2265 = vmax.f32 %v2239, 0.0
    %v2266 = vmax.f32 %v2244, 0.0
    %v2267 = vmax.f32 %v2249, 0.0
    %2268 = vst [vmem:[#allocation5] sm:$0xff] %v2252
    %2269 = vst [vmem:[#allocation5 + $0x8] sm:$0xff] %v2253
    %2270 = vst [vmem:[#allocation5 + $0x10] sm:$0xff] %v2254
    %2271 = vst [vmem:[#allocation5 + $0x18] sm:$0xff] %v2255
    %2272 = vst [vmem:[#allocation5 + $0x20] sm:$0xff] %v2256
    %2273 = vst [vmem:[#allocation5 + $0x28] sm:$0xff] %v2257
    %2274 = vst [vmem:[#allocation5 + $0x30] sm:$0xff] %v2258
    %2275 = vst [vmem:[#allocation5 + $0x38] sm:$0xff] %v2259
    %2276 = vst [vmem:[#allocation5 + $0x40] sm:$0xff] %v2260
    %2277 = vst [vmem:[#allocation5 + $0x48] sm:$0xff] %v2261
    %2278 = vst [vmem:[#allocation5 + $0x50] sm:$0xff] %v2262
    %2279 = vst [vmem:[#allocation5 + $0x58] sm:$0xff] %v2263
    %2280 = vst [vmem:[#allocation5 + $0x60] sm:$0xff] %v2264
    %2281 = vst [vmem:[#allocation5 + $0x68] sm:$0xff] %v2265
    %2282 = vst [vmem:[#allocation5 + $0x70] sm:$0xff] %v2266
    %2283 = vst [vmem:[#allocation5 + $0x78] sm:$0xff] %v2267
    // Predicated region
    $region34: #{tpu_custom_call.1} parent=1 // pred_check
      _
    $region35: #{tpu_custom_call.1} parent=1 // pred_check_branch
      %2285 = sbr.rel (0) target = $region37
    $region36: #{tpu_custom_call.1} parent=1 // pred_region
      %s2287 = ssub.s32 2048, 2048
      %2288 = vsyncadd [#allocation4], %s2287
      %s2289 = sshll.u32 [#allocation5], 4
      %s2290 = int_to_ptr.vmem [resolvable:$true] %s2289
      %2295 = dma.vmem_to_hbm [thread:$0]  %s2290, 2048, %s7, [#allocation4], 128, 128, 8
    $region37: #{tpu_custom_call.1} parent=1 // pred_fallthru
      _
    // Predicated region
    $region38: #{tpu_custom_call.1} parent=1 // pred_check
      _
    $region39: #{tpu_custom_call.1} parent=1 // pred_check_branch
      %2297 = sbr.rel (0) target = $region41
    $region40: #{tpu_custom_call.1} parent=1 // pred_region
      %2298 = dma.done [#allocation4], 2048
    $region41: #{tpu_custom_call.1} parent=1 // pred_fallthru
      _
    %2299 = vsyncpa [#allocation3], 1
    %2300 = vsyncpa [#allocation4], 1

</llo_original>
